<compile_context>
chip_gen: v7x
topology: tpu7x:2x2x1
jax: 0.10.0
libtpu: 0.0.40
codegen_flags: <defaults>
</compile_context>

<pallas_src>
import jax
import jax.numpy as jnp
import numpy as np
from jax import lax
from jax.experimental import pallas as pl
from jax.experimental.pallas import tpu as pltpu  # noqa: F401  (TPU backend)

# ----------------------------------------------------------------------------
# Hyper-parameters mirroring the module-level constants of model.py
# ----------------------------------------------------------------------------
IMG_SIZE = 16
FIRST_CONV_CHANNEL_NUM = 8
CONV_KERNEL_SIZE = 3
CONV_STRIDE_SIZE = 1
CONV_PADDING_SIZE = 1
POOLING_KERNEL_SIZE = 2
POOLING_STRIDE_SIZE = 2
POOLING_PADDING_SIZE = 0
MLP_HIDDEN_LAYER_STRUCT = (32, 10)  # last entry is the network output dim
BN_EPS = 1e-5

IN_CHANNELS = 4
CONV_HIDDEN_LAYER_NUM = 2
BATCH = 2

# Derived static dims
C0 = IN_CHANNELS                      # 4
C1 = FIRST_CONV_CHANNEL_NUM           # 8   conv1 out channels
C2 = 2 * C1                           # 16  conv2 out channels
HP = IMG_SIZE // POOLING_STRIDE_SIZE  # 8   spatial after 2x2 maxpool
ROW_PAD = 2                           # zero pad rows per batch per side (keeps rows 8-aligned)
RPB = IMG_SIZE + 2 * ROW_PAD          # 20  rows per batch in the row-slab
NR = BATCH * RPB                      # 40  total slab rows (b, y)
XLANES = IMG_SIZE * C0                # 64  input lanes  (x, ci)
L1 = IMG_SIZE * C1                    # 128 conv1 lanes  (x, co)
L2 = HP * C2                          # 128 conv2 lanes  (x, co)
FC1_DIM, FC_OUT = MLP_HIDDEN_LAYER_STRUCT

# ----------------------------------------------------------------------------
# Row offsets inside the single packed parameter slab (all starts 8-aligned)
# ----------------------------------------------------------------------------
W1_OFF = 0        # 3 x (64,128)  conv1 per-y-tap weights (x-shift + x-pad folded in)
QW2_OFF = 192     # 3 x (128,128) conv2 per-y-tap weights (x-shift/pad + pool compaction folded)
S_OFF = 576       # 4 x (40,40)   row-shift 0/1 selectors for shifts (-2,-1,+1,+2)
XSH_OFF = 736     # (128,128)     lane shift-by-+8 selector (x maxpool partner)
AFF1_OFF = 864    # (3,128)       conv1 bias / BN scale / BN shift, tiled over x
AFF2_OFF = 872    # (3,128)
AVG_OFF = 880     # (2,40)        global-avg-pool row weights (1/8 at valid rows)
RW1_OFF = 888     # (128,32)      fc1 weight with the lane-average (1/8) folded in
BF1_OFF = 1016    # (1,32)
WF2_OFF = 1024    # (32,10)
BF2_OFF = 1056    # (1,10)
P_ROWS = 1064


# ----------------------------------------------------------------------------
# The single fused Pallas kernel
# ----------------------------------------------------------------------------
def _cnn2d_fused_kernel(x_ref, p_ref, o_ref):
    f32 = jnp.float32

    def mm(a, b):
        return jnp.dot(a, b, preferred_element_type=f32)

    x = x_ref[...]                                                    # (40, 64)

    # Row-shift 0/1 selection matrices, applied on the (otherwise idle) MXU.
    s_m1 = p_ref[S_OFF + 1 * NR:S_OFF + 2 * NR, 0:NR]                 # rows shifted by -1
    s_p1 = p_ref[S_OFF + 2 * NR:S_OFF + 3 * NR, 0:NR]                 # rows shifted by +1
    s_m2 = p_ref[S_OFF + 0 * NR:S_OFF + 1 * NR, 0:NR]                 # -2, valid pooled rows only
    s_p2 = p_ref[S_OFF + 3 * NR:S_OFF + 4 * NR, 0:NR]                 # +2, valid pooled rows only

    # ---- Conv1 (3x3, pad 1): one matmul per y-tap, x-taps folded into weights.
    c1 = mm(x, p_ref[W1_OFF + 1 * XLANES:W1_OFF + 2 * XLANES, :])                  # ky = 1
    c1 = c1 + mm(mm(s_m1, x), p_ref[W1_OFF + 0 * XLANES:W1_OFF + 1 * XLANES, :])   # ky = 0
    c1 = c1 + mm(mm(s_p1, x), p_ref[W1_OFF + 2 * XLANES:W1_OFF + 3 * XLANES, :])   # ky = 2

    # bias -> ReLU -> BatchNorm(eval) as one per-lane affine.
    aff1 = p_ref[AFF1_OFF:AFF1_OFF + 3, :]
    a1 = jnp.maximum(c1 + aff1[0:1, :], 0.0) * aff1[1:2, :] + aff1[2:3, :]          # (40,128)

    # ---- MaxPool2d(2,2): y-partner via row-shift matmul, x-partner via lane-shift matmul.
    my = jnp.maximum(a1, mm(s_p1, a1))
    mxy = jnp.maximum(my, mm(my, p_ref[XSH_OFF:XSH_OFF + L1, :]))     # pooled at even rows / even x groups

    # ---- Conv2 (3x3, pad 1) on the pooled grid (row stride 2): 3 y-tap matmuls.
    #      Zero padding & garbage-row suppression live in the s_{+-2} selectors
    #      and in the zeroed columns of the folded weights.
    c2 = mm(mxy, p_ref[QW2_OFF + 1 * L1:QW2_OFF + 2 * L1, :])                       # ky = 1
    c2 = c2 + mm(mm(s_m2, mxy), p_ref[QW2_OFF + 0 * L1:QW2_OFF + 1 * L1, :])        # ky = 0
    c2 = c2 + mm(mm(s_p2, mxy), p_ref[QW2_OFF + 2 * L1:QW2_OFF + 3 * L1, :])        # ky = 2
    aff2 = p_ref[AFF2_OFF:AFF2_OFF + 3, :]
    c2a = jnp.maximum(c2 + aff2[0:1, :], 0.0) * aff2[1:2, :] + aff2[2:3, :]          # (40,128)

    # ---- Global avg pool (row average via 1/8 matmul; lane average folded into fc1),
    #      then the MLP head: Linear -> ReLU -> Linear.
    rowavg = mm(p_ref[AVG_OFF:AVG_OFF + BATCH, 0:NR], c2a)                           # (2,128)
    h = jnp.maximum(mm(rowavg, p_ref[RW1_OFF:RW1_OFF + L2, 0:FC1_DIM])
                    + p_ref[BF1_OFF:BF1_OFF + 1, 0:FC1_DIM], 0.0)                    # (2,32)
    out = (mm(h, p_ref[WF2_OFF:WF2_OFF + FC1_DIM, 0:FC_OUT])
           + p_ref[BF2_OFF:BF2_OFF + 1, 0:FC_OUT])                                   # (2,10)
    o_ref[...] = out.astype(o_ref.dtype)


def fused_cnn_forward(x_slab, pslab):
    return pl.pallas_call(
        _cnn2d_fused_kernel,
        out_shape=jax.ShapeDtypeStruct((BATCH, FC_OUT), jnp.float32),
        grid=(1,),
        in_specs=[pl.BlockSpec((NR, XLANES), lambda i: (0, 0)),
                  pl.BlockSpec((P_ROWS, 128), lambda i: (0, 0))],
        out_specs=pl.BlockSpec((BATCH, FC_OUT), lambda i: (0, 0)),
    )(x_slab, pslab)


@jax.jit
def cnn2d_forward(x_nchw, pslab):
    # The ONLY per-call XLA work: layout the raw 8 KiB input as the row slab.
    xt = jnp.transpose(x_nchw, (0, 2, 3, 1)).astype(jnp.float32)         # NCHW -> NHWC
    xp = jnp.pad(xt, ((0, 0), (ROW_PAD, ROW_PAD), (0, 0), (0, 0)))       # zero y-pad rows
    x_slab = xp.reshape(NR, XLANES)                                      # rows=(b,y), lanes=(x,ci)
    return fused_cnn_forward(x_slab, pslab)


# ----------------------------------------------------------------------------
# One-time host-side packing of all parameters/constants into a single slab
# ----------------------------------------------------------------------------
def _valid_pooled_rows():
    v = np.zeros((NR,), bool)
    for b in range(BATCH):
        for yo in range(HP):
            v[b * RPB + ROW_PAD + 2 * yo] = True
    return v


def prepare_kernel_params(params):
    p1, p2 = params["convs"]
    f1, f2 = params["fcs"]
    w1 = np.asarray(p1["w"], np.float32)          # (C1, C0, 3, 3)
    w2 = np.asarray(p2["w"], np.float32)          # (C2, C1, 3, 3)
    slab = np.zeros((P_ROWS, 128), np.float32)

    # conv1: per-y-tap (64,128) weights; x-shift and x zero-padding folded in.
    for syi in range(CONV_KERNEL_SIZE):
        blk = np.zeros((XLANES, L1), np.float32)
        for sxi in range(CONV_KERNEL_SIZE):
            sx = sxi - CONV_PADDING_SIZE
            wt = w1[:, :, syi, sxi].T             # (ci, co)
            for xo in range(IMG_SIZE):
                xi = xo + sx
                if 0 <= xi < IMG_SIZE:
                    blk[xi * C0:(xi + 1) * C0, xo * C1:(xo + 1) * C1] += wt
        slab[W1_OFF + syi * XLANES:W1_OFF + (syi + 1) * XLANES, :L1] = blk

    # conv2: per-y-tap (128,128) weights; x-shift/pad AND the even-lane maxpool
    # compaction folded in (rows indexed by the conv1/mxy lane layout).
    for syi in range(CONV_KERNEL_SIZE):
        blk = np.zeros((L1, L2), np.float32)
        for sxi in range(CONV_KERNEL_SIZE):
            sx = sxi - CONV_PADDING_SIZE
            wt = w2[:, :, syi, sxi].T             # (ci, co)
            for xo in range(HP):
                xi = xo + sx
                if 0 <= xi < HP:
                    l1 = 2 * xi                   # pooled value sits at even x lane group
                    blk[l1 * C1:(l1 + 1) * C1, xo * C2:(xo + 1) * C2] += wt
        slab[QW2_OFF + syi * L1:QW2_OFF + (syi + 1) * L1, :L2] = blk

    # Row-shift selectors: (S_s @ M)[r] = M[r+s] (shift in zeros, no wrap).
    # The +-2 shifts additionally keep only *valid pooled* source rows, which is
    # exactly conv2's zero padding at the y seams.
    vp = _valid_pooled_rows()
    for k, s in enumerate((-2, -1, 1, 2)):
        S = np.zeros((NR, NR), np.float32)
        for r in range(NR):
            src = r + s
            if 0 <= src < NR and (abs(s) != 2 or vp[src]):
                S[r, src] = 1.0
        slab[S_OFF + k * NR:S_OFF + (k + 1) * NR, :NR] = S

    # Lane shift by +8: (M @ XSH)[:, l] = M[:, l+8]   (x maxpool partner).
    xsh = np.zeros((L1, L1), np.float32)
    for l in range(L1 - C1):
        xsh[l + C1, l] = 1.0
    slab[XSH_OFF:XSH_OFF + L1, :L1] = xsh

    # bias / BN(eval) affines, pre-tiled over the x lane groups.
    s1 = np.asarray(p1["gamma"], np.float32) / np.sqrt(np.asarray(p1["rvar"], np.float32) + BN_EPS)
    slab[AFF1_OFF + 0, :L1] = np.tile(np.asarray(p1["b"], np.float32), IMG_SIZE)
    slab[AFF1_OFF + 1, :L1] = np.tile(s1, IMG_SIZE)
    slab[AFF1_OFF + 2, :L1] = np.tile(
        np.asarray(p1["beta"], np.float32) - np.asarray(p1["rmean"], np.float32) * s1, IMG_SIZE)
    s2 = np.asarray(p2["gamma"], np.float32) / np.sqrt(np.asarray(p2["rvar"], np.float32) + BN_EPS)
    slab[AFF2_OFF + 0, :L2] = np.tile(np.asarray(p2["b"], np.float32), HP)
    slab[AFF2_OFF + 1, :L2] = np.tile(s2, HP)
    slab[AFF2_OFF + 2, :L2] = np.tile(
        np.asarray(p2["beta"], np.float32) - np.asarray(p2["rmean"], np.float32) * s2, HP)

    # Global avg pool: 1/8 over the 8 valid y rows of each batch.
    for b in range(BATCH):
        for yo in range(HP):
            slab[AVG_OFF + b, b * RPB + ROW_PAD + 2 * yo] = 1.0 / HP

    # fc1 (with the 1/8 lane-average folded in), biases and fc2.
    wf1 = np.asarray(f1["w"], np.float32)         # (C2, FC1_DIM)
    slab[RW1_OFF:RW1_OFF + L2, :FC1_DIM] = np.tile(wf1, (HP, 1)) / HP
    slab[BF1_OFF, :FC1_DIM] = np.asarray(f1["b"], np.float32)
    slab[WF2_OFF:WF2_OFF + FC1_DIM, :FC_OUT] = np.asarray(f2["w"], np.float32)
    slab[BF2_OFF, :FC_OUT] = np.asarray(f2["b"], np.float32)
    return jnp.asarray(slab)


# ----------------------------------------------------------------------------
# Pure-JAX reference (uses lax.conv) for correctness checking
# ----------------------------------------------------------------------------
def maxpool2x2(x_nhwc):
    B, H, W, C = x_nhwc.shape
    return jnp.max(x_nhwc.reshape(B, H // 2, 2, W // 2, 2, C), axis=(2, 4))


def reference_forward(x_nchw, params):
    x = jnp.transpose(x_nchw, (0, 2, 3, 1))
    convs = params["convs"]
    for i, p in enumerate(convs):
        w_hwio = jnp.transpose(p["w"], (2, 3, 1, 0))
        x = lax.conv_general_dilated(
            x, w_hwio, window_strides=(1, 1), padding=((1, 1), (1, 1)),
            dimension_numbers=("NHWC", "HWIO", "NHWC"),
            precision=lax.Precision.HIGHEST)
        x = x + p["b"]
        x = jnp.maximum(x, 0.0)
        x = (x - p["rmean"]) / jnp.sqrt(p["rvar"] + BN_EPS) * p["gamma"] + p["beta"]
        if i != len(convs) - 1:
            x = maxpool2x2(x)
        else:
            x = jnp.mean(x, axis=(1, 2))
    fcs = params["fcs"]
    for i, p in enumerate(fcs):
        x = jnp.dot(x, p["w"], precision=lax.Precision.HIGHEST) + p["b"]
        if i != len(fcs) - 1:
            x = jnp.maximum(x, 0.0)
    return x


# ----------------------------------------------------------------------------
# Deterministic parameter construction
# ----------------------------------------------------------------------------
def init_params(key):
    params = {"convs": [], "fcs": []}
    c_in = IN_CHANNELS
    c_out = FIRST_CONV_CHANNEL_NUM
    for _ in range(CONV_HIDDEN_LAYER_NUM):
        key, kw_, kb, kg, kbe, km, kv = jax.random.split(key, 7)
        params["convs"].append(dict(
            w=0.1 * jax.random.normal(kw_, (c_out, c_in, CONV_KERNEL_SIZE, CONV_KERNEL_SIZE), jnp.float32),
            b=0.05 * jax.random.normal(kb, (c_out,), jnp.float32),
            gamma=1.0 + 0.1 * jax.random.normal(kg, (c_out,), jnp.float32),
            beta=0.05 * jax.random.normal(kbe, (c_out,), jnp.float32),
            rmean=0.1 * jax.random.normal(km, (c_out,), jnp.float32),
            rvar=1.0 + 0.1 * jax.random.uniform(kv, (c_out,), jnp.float32),
        ))
        c_in, c_out = c_out, c_out * 2
    in_dim = c_in  # last conv channels * 1 * 1 (global avg pool)
    for h in MLP_HIDDEN_LAYER_STRUCT:
        key, kw_, kb = jax.random.split(key, 3)
        params["fcs"].append(dict(
            w=0.1 * jax.random.normal(kw_, (in_dim, h), jnp.float32),
            b=0.05 * jax.random.normal(kb, (h,), jnp.float32),
        ))
        in_dim = h
    return params


if __name__ == "__main__":
    key = jax.random.PRNGKey(0)
    key, kx = jax.random.split(key)
    x = jax.random.normal(kx, (BATCH, IN_CHANNELS, IMG_SIZE, IMG_SIZE), jnp.float32)  # NCHW
    params = init_params(key)
    pslab = prepare_kernel_params(params)

    out = jax.block_until_ready(cnn2d_forward(x, pslab))
    ref = jax.block_until_ready(reference_forward(x, params))

    assert out.shape == (BATCH, MLP_HIDDEN_LAYER_STRUCT[-1]), out.shape
    assert jnp.allclose(out, ref, atol=3e-4, rtol=3e-4), (out, ref)
    print("KERNEL_OK")
</pallas_src>

<mosaic_0001>
module attributes {stable_mosaic.version = 11 : i64} {
  func.func @_cnn2d_fused_kernel(%arg0: i32, %arg1: memref<40x64xf32, #tpu.memory_space<vmem>>, %arg2: memref<1064x128xf32, #tpu.memory_space<vmem>>, %arg3: memref<2x10xf32, #tpu.memory_space<vmem>>) attributes {dimension_semantics = [#tpu.dimension_semantics<arbitrary>], iteration_bounds = array<i64: 1>, scalar_prefetch = 0 : i64, scratch_operands = 0 : i64, tpu.core_type = #tpu.core_type<tc>, window_params = [{pipeline_mode = #tpu.pipeline_mode<synchronous>, transform_indices = @transform_0, window_bounds = array<i64: 40, 64>}, {pipeline_mode = #tpu.pipeline_mode<synchronous>, transform_indices = @transform_1, window_bounds = array<i64: 1064, 128>}, {pipeline_mode = #tpu.pipeline_mode<synchronous>, transform_indices = @transform_2, window_bounds = array<i64: 2, 10>}]} {
    %c0 = arith.constant 0 : index
    %c0_0 = arith.constant 0 : index
    %0 = vector.load %arg1[%c0, %c0_0] : memref<40x64xf32, #tpu.memory_space<vmem>>, vector<40x64xf32>
    %c616 = arith.constant 616 : index
    %c0_1 = arith.constant 0 : index
    %1 = vector.load %arg2[%c616, %c0_1] : memref<1064x128xf32, #tpu.memory_space<vmem>>, vector<40x40xf32>
    %c656 = arith.constant 656 : index
    %c0_2 = arith.constant 0 : index
    %2 = vector.load %arg2[%c656, %c0_2] : memref<1064x128xf32, #tpu.memory_space<vmem>>, vector<40x40xf32>
    %c576 = arith.constant 576 : index
    %c0_3 = arith.constant 0 : index
    %3 = vector.load %arg2[%c576, %c0_3] : memref<1064x128xf32, #tpu.memory_space<vmem>>, vector<40x40xf32>
    %c696 = arith.constant 696 : index
    %c0_4 = arith.constant 0 : index
    %4 = vector.load %arg2[%c696, %c0_4] : memref<1064x128xf32, #tpu.memory_space<vmem>>, vector<40x40xf32>
    %c64 = arith.constant 64 : index
    %c0_5 = arith.constant 0 : index
    %5 = vector.load %arg2[%c64, %c0_5] : memref<1064x128xf32, #tpu.memory_space<vmem>>, vector<64x128xf32>
    %cst = arith.constant dense<0.000000e+00> : vector<40x128xf32>
    %6 = tpu.matmul %0, %5, %cst {dimension_numbers = #tpu.dot_dimension_numbers<[1], [0], [0], [1], [0, 0, 1, 1], [], []>} : vector<40x64xf32>, vector<64x128xf32>, vector<40x128xf32> -> vector<40x128xf32>
    %cst_6 = arith.constant dense<0.000000e+00> : vector<40x64xf32>
    %7 = tpu.matmul %1, %0, %cst_6 {dimension_numbers = #tpu.dot_dimension_numbers<[1], [0], [0], [1], [0, 0, 1, 1], [], []>} : vector<40x40xf32>, vector<40x64xf32>, vector<40x64xf32> -> vector<40x64xf32>
    %c0_7 = arith.constant 0 : index
    %c0_8 = arith.constant 0 : index
    %8 = vector.load %arg2[%c0_7, %c0_8] : memref<1064x128xf32, #tpu.memory_space<vmem>>, vector<64x128xf32>
    %cst_9 = arith.constant dense<0.000000e+00> : vector<40x128xf32>
    %9 = tpu.matmul %7, %8, %cst_9 {dimension_numbers = #tpu.dot_dimension_numbers<[1], [0], [0], [1], [0, 0, 1, 1], [], []>} : vector<40x64xf32>, vector<64x128xf32>, vector<40x128xf32> -> vector<40x128xf32>
    %10 = arith.addf %6, %9 : vector<40x128xf32>
    %cst_10 = arith.constant dense<0.000000e+00> : vector<40x64xf32>
    %11 = tpu.matmul %2, %0, %cst_10 {dimension_numbers = #tpu.dot_dimension_numbers<[1], [0], [0], [1], [0, 0, 1, 1], [], []>} : vector<40x40xf32>, vector<40x64xf32>, vector<40x64xf32> -> vector<40x64xf32>
    %c128 = arith.constant 128 : index
    %c0_11 = arith.constant 0 : index
    %12 = vector.load %arg2[%c128, %c0_11] : memref<1064x128xf32, #tpu.memory_space<vmem>>, vector<64x128xf32>
    %cst_12 = arith.constant dense<0.000000e+00> : vector<40x128xf32>
    %13 = tpu.matmul %11, %12, %cst_12 {dimension_numbers = #tpu.dot_dimension_numbers<[1], [0], [0], [1], [0, 0, 1, 1], [], []>} : vector<40x64xf32>, vector<64x128xf32>, vector<40x128xf32> -> vector<40x128xf32>
    %14 = arith.addf %10, %13 : vector<40x128xf32>
    %c864 = arith.constant 864 : index
    %c0_13 = arith.constant 0 : index
    %15 = vector.load %arg2[%c864, %c0_13] : memref<1064x128xf32, #tpu.memory_space<vmem>>, vector<3x128xf32>
    %16 = vector.extract_strided_slice %15 {offsets = [0, 0], sizes = [1, 128], strides = [1, 1]} : vector<3x128xf32> to vector<1x128xf32>
    %17 = vector.broadcast %16 : vector<1x128xf32> to vector<40x128xf32>
    %18 = arith.addf %14, %17 : vector<40x128xf32>
    %cst_14 = arith.constant 0.000000e+00 : f32
    %19 = vector.broadcast %cst_14 : f32 to vector<40x128xf32>
    %20 = arith.maximumf %18, %19 : vector<40x128xf32>
    %21 = vector.extract_strided_slice %15 {offsets = [1, 0], sizes = [1, 128], strides = [1, 1]} : vector<3x128xf32> to vector<1x128xf32>
    %22 = vector.broadcast %21 : vector<1x128xf32> to vector<40x128xf32>
    %23 = arith.mulf %20, %22 : vector<40x128xf32>
    %24 = vector.extract_strided_slice %15 {offsets = [2, 0], sizes = [1, 128], strides = [1, 1]} : vector<3x128xf32> to vector<1x128xf32>
    %25 = vector.broadcast %24 : vector<1x128xf32> to vector<40x128xf32>
    %26 = arith.addf %23, %25 : vector<40x128xf32>
    %cst_15 = arith.constant dense<0.000000e+00> : vector<40x128xf32>
    %27 = tpu.matmul %2, %26, %cst_15 {dimension_numbers = #tpu.dot_dimension_numbers<[1], [0], [0], [1], [0, 0, 1, 1], [], []>} : vector<40x40xf32>, vector<40x128xf32>, vector<40x128xf32> -> vector<40x128xf32>
    %28 = arith.maximumf %26, %27 : vector<40x128xf32>
    %c736 = arith.constant 736 : index
    %c0_16 = arith.constant 0 : index
    %29 = vector.load %arg2[%c736, %c0_16] : memref<1064x128xf32, #tpu.memory_space<vmem>>, vector<128x128xf32>
    %cst_17 = arith.constant dense<0.000000e+00> : vector<40x128xf32>
    %30 = tpu.matmul %28, %29, %cst_17 {dimension_numbers = #tpu.dot_dimension_numbers<[1], [0], [0], [1], [0, 0, 1, 1], [], []>} : vector<40x128xf32>, vector<128x128xf32>, vector<40x128xf32> -> vector<40x128xf32>
    %31 = arith.maximumf %28, %30 : vector<40x128xf32>
    %c320 = arith.constant 320 : index
    %c0_18 = arith.constant 0 : index
    %32 = vector.load %arg2[%c320, %c0_18] : memref<1064x128xf32, #tpu.memory_space<vmem>>, vector<128x128xf32>
    %cst_19 = arith.constant dense<0.000000e+00> : vector<40x128xf32>
    %33 = tpu.matmul %31, %32, %cst_19 {dimension_numbers = #tpu.dot_dimension_numbers<[1], [0], [0], [1], [0, 0, 1, 1], [], []>} : vector<40x128xf32>, vector<128x128xf32>, vector<40x128xf32> -> vector<40x128xf32>
    %cst_20 = arith.constant dense<0.000000e+00> : vector<40x128xf32>
    %34 = tpu.matmul %3, %31, %cst_20 {dimension_numbers = #tpu.dot_dimension_numbers<[1], [0], [0], [1], [0, 0, 1, 1], [], []>} : vector<40x40xf32>, vector<40x128xf32>, vector<40x128xf32> -> vector<40x128xf32>
    %c192 = arith.constant 192 : index
    %c0_21 = arith.constant 0 : index
    %35 = vector.load %arg2[%c192, %c0_21] : memref<1064x128xf32, #tpu.memory_space<vmem>>, vector<128x128xf32>
    %cst_22 = arith.constant dense<0.000000e+00> : vector<40x128xf32>
    %36 = tpu.matmul %34, %35, %cst_22 {dimension_numbers = #tpu.dot_dimension_numbers<[1], [0], [0], [1], [0, 0, 1, 1], [], []>} : vector<40x128xf32>, vector<128x128xf32>, vector<40x128xf32> -> vector<40x128xf32>
    %37 = arith.addf %33, %36 : vector<40x128xf32>
    %cst_23 = arith.constant dense<0.000000e+00> : vector<40x128xf32>
    %38 = tpu.matmul %4, %31, %cst_23 {dimension_numbers = #tpu.dot_dimension_numbers<[1], [0], [0], [1], [0, 0, 1, 1], [], []>} : vector<40x40xf32>, vector<40x128xf32>, vector<40x128xf32> -> vector<40x128xf32>
    %c448 = arith.constant 448 : index
    %c0_24 = arith.constant 0 : index
    %39 = vector.load %arg2[%c448, %c0_24] : memref<1064x128xf32, #tpu.memory_space<vmem>>, vector<128x128xf32>
    %cst_25 = arith.constant dense<0.000000e+00> : vector<40x128xf32>
    %40 = tpu.matmul %38, %39, %cst_25 {dimension_numbers = #tpu.dot_dimension_numbers<[1], [0], [0], [1], [0, 0, 1, 1], [], []>} : vector<40x128xf32>, vector<128x128xf32>, vector<40x128xf32> -> vector<40x128xf32>
    %41 = arith.addf %37, %40 : vector<40x128xf32>
    %c872 = arith.constant 872 : index
    %c0_26 = arith.constant 0 : index
    %42 = vector.load %arg2[%c872, %c0_26] : memref<1064x128xf32, #tpu.memory_space<vmem>>, vector<3x128xf32>
    %43 = vector.extract_strided_slice %42 {offsets = [0, 0], sizes = [1, 128], strides = [1, 1]} : vector<3x128xf32> to vector<1x128xf32>
    %44 = vector.broadcast %43 : vector<1x128xf32> to vector<40x128xf32>
    %45 = arith.addf %41, %44 : vector<40x128xf32>
    %cst_27 = arith.constant 0.000000e+00 : f32
    %46 = vector.broadcast %cst_27 : f32 to vector<40x128xf32>
    %47 = arith.maximumf %45, %46 : vector<40x128xf32>
    %48 = vector.extract_strided_slice %42 {offsets = [1, 0], sizes = [1, 128], strides = [1, 1]} : vector<3x128xf32> to vector<1x128xf32>
    %49 = vector.broadcast %48 : vector<1x128xf32> to vector<40x128xf32>
    %50 = arith.mulf %47, %49 : vector<40x128xf32>
    %51 = vector.extract_strided_slice %42 {offsets = [2, 0], sizes = [1, 128], strides = [1, 1]} : vector<3x128xf32> to vector<1x128xf32>
    %52 = vector.broadcast %51 : vector<1x128xf32> to vector<40x128xf32>
    %53 = arith.addf %50, %52 : vector<40x128xf32>
    %c880 = arith.constant 880 : index
    %c0_28 = arith.constant 0 : index
    %54 = vector.load %arg2[%c880, %c0_28] : memref<1064x128xf32, #tpu.memory_space<vmem>>, vector<2x40xf32>
    %cst_29 = arith.constant dense<0.000000e+00> : vector<2x128xf32>
    %55 = tpu.matmul %54, %53, %cst_29 {dimension_numbers = #tpu.dot_dimension_numbers<[1], [0], [0], [1], [0, 0, 1, 1], [], []>} : vector<2x40xf32>, vector<40x128xf32>, vector<2x128xf32> -> vector<2x128xf32>
    %c888 = arith.constant 888 : index
    %c0_30 = arith.constant 0 : index
    %56 = vector.load %arg2[%c888, %c0_30] : memref<1064x128xf32, #tpu.memory_space<vmem>>, vector<128x32xf32>
    %cst_31 = arith.constant dense<0.000000e+00> : vector<2x32xf32>
    %57 = tpu.matmul %55, %56, %cst_31 {dimension_numbers = #tpu.dot_dimension_numbers<[1], [0], [0], [1], [0, 0, 1, 1], [], []>} : vector<2x128xf32>, vector<128x32xf32>, vector<2x32xf32> -> vector<2x32xf32>
    %c1016 = arith.constant 1016 : index
    %c0_32 = arith.constant 0 : index
    %58 = vector.load %arg2[%c1016, %c0_32] : memref<1064x128xf32, #tpu.memory_space<vmem>>, vector<1x32xf32>
    %59 = vector.broadcast %58 : vector<1x32xf32> to vector<2x32xf32>
    %60 = arith.addf %57, %59 : vector<2x32xf32>
    %cst_33 = arith.constant 0.000000e+00 : f32
    %61 = vector.broadcast %cst_33 : f32 to vector<2x32xf32>
    %62 = arith.maximumf %60, %61 : vector<2x32xf32>
    %c1024 = arith.constant 1024 : index
    %c0_34 = arith.constant 0 : index
    %63 = vector.load %arg2[%c1024, %c0_34] : memref<1064x128xf32, #tpu.memory_space<vmem>>, vector<32x10xf32>
    %cst_35 = arith.constant dense<0.000000e+00> : vector<2x10xf32>
    %64 = tpu.matmul %62, %63, %cst_35 {dimension_numbers = #tpu.dot_dimension_numbers<[1], [0], [0], [1], [0, 0, 1, 1], [], []>} : vector<2x32xf32>, vector<32x10xf32>, vector<2x10xf32> -> vector<2x10xf32>
    %c1056 = arith.constant 1056 : index
    %c0_36 = arith.constant 0 : index
    %65 = vector.load %arg2[%c1056, %c0_36] : memref<1064x128xf32, #tpu.memory_space<vmem>>, vector<1x10xf32>
    %66 = vector.broadcast %65 : vector<1x10xf32> to vector<2x10xf32>
    %67 = arith.addf %64, %66 : vector<2x10xf32>
    %c0_37 = arith.constant 0 : index
    %c0_38 = arith.constant 0 : index
    %68 = vector.load %arg3[%c0_37, %c0_38] : memref<2x10xf32, #tpu.memory_space<vmem>>, vector<2x10xf32>
    tpu.vector_store %arg3[%c0_37, %c0_38], %67 {strides = array<i32>} : memref<2x10xf32, #tpu.memory_space<vmem>>, vector<2x10xf32>,
    return
  }
  func.func @transform_0(%arg0: i32) -> (i32, i32) {
    %c0_i32 = arith.constant 0 : i32
    %c0_i32_0 = arith.constant 0 : i32
    %c0_i32_1 = arith.constant 0 : i32
    return %c0_i32, %c0_i32_0 : i32, i32
  }
  func.func @transform_1(%arg0: i32) -> (i32, i32) {
    %c0_i32 = arith.constant 0 : i32
    %c0_i32_0 = arith.constant 0 : i32
    %c0_i32_1 = arith.constant 0 : i32
    return %c0_i32, %c0_i32_0 : i32, i32
  }
  func.func @transform_2(%arg0: i32) -> (i32, i32) {
    %c0_i32 = arith.constant 0 : i32
    %c0_i32_0 = arith.constant 0 : i32
    %c0_i32_1 = arith.constant 0 : i32
    return %c0_i32, %c0_i32_0 : i32, i32
  }
}

</mosaic_0001>

<llo_original>
// kernel: cnn2d_forward.1
$region0: #{cnn2d_forward.1}
  #allocation0 [shape = 'u32[]', space=smem, size = 0x4, offset = 0x4, fixed_abs, tag = 'smem constant byte address 0x4 - core index']
  #allocation1 [shape = 'u32[144,128]{1,0:T(1,128)}', space=vmem, size = 0x12000, scoped, tag = 'internal scratch']
  %s0 = inlined_call_operand.vmem [shape: f32[40,64], index: 0, kind: input, shape index: {}]
  %s1 = inlined_call_operand.hbm [shape: f32[1064,128], index: 1, kind: input, shape index: {}]
  %s2 = inlined_call_operand.hbm [shape: f32[2,10], index: 2, kind: output, shape index: {}]
  %s3 = sld [smem:[#allocation0]]
  $region22: #{cnn2d_forward.1} parent=0
    _
  %s5 = ssub.s32 1, %s3
  %s6 = scalar_select 0, %s5, %s3
  $region1: #{cnn2d_forward.1} parent=0
    #allocation2 [shape = 'u8[544768]{0}', space=vmem, size = 0x85000, scoped, tag = 'input window, operand 1, single buffered']
    #allocation3 [shape = 's32[1]{0}', space=sflag, size = 0x4, scoped, tag = 'scoped memory for cnn2d_forward.1']
    #allocation4 [shape = 's32[1]{0}', space=sflag, size = 0x4, scoped, tag = 'scoped memory for cnn2d_forward.1']
    #allocation5 [shape = 'u8[1024]{0}', space=vmem, size = 0x400, scoped, tag = 'output window, operand 0, single buffered']
    %7 = vsyncpa [#allocation3], 0
    %8 = vsyncpa [#allocation4], 0
    // Predicated region
    $region2: #{cnn2d_forward.1} parent=1 // pred_check
      _
    $region3: #{cnn2d_forward.1} parent=1 // pred_check_branch
      %10 = sbr.rel (0) target = $region5
    $region4: #{cnn2d_forward.1} parent=1 // pred_region
      _
    $region5: #{cnn2d_forward.1} parent=1 // pred_fallthru
      _
    // Predicated region
    $region6: #{cnn2d_forward.1} parent=1 // pred_check
      _
    $region7: #{cnn2d_forward.1} parent=1 // pred_check_branch
      %12 = sbr.rel (0) target = $region9
    $region8: #{cnn2d_forward.1} parent=1 // pred_region
      %s14 = ssub.s32 17024, 17024
      %15 = vsyncadd [#allocation3], %s14
      %s16 = sshll.u32 [#allocation2], 4
      %s17 = int_to_ptr.vmem [resolvable:$true] %s16
      %22 = dma.hbm_to_vmem [thread:$0]  %s1, 17024, %s17, [#allocation3], 128, 128, 8
    $region9: #{cnn2d_forward.1} parent=1 // pred_fallthru
      _
    // Predicated region
    $region10: #{cnn2d_forward.1} parent=1 // pred_check
      _
    $region11: #{cnn2d_forward.1} parent=1 // pred_check_branch
      %24 = sbr.rel (0) target = $region13
    $region12: #{cnn2d_forward.1} parent=1 // pred_region
      %25 = dma.done [#allocation3], 17024
    $region13: #{cnn2d_forward.1} parent=1 // pred_fallthru
      _
    %v26 = vld [vmem:[%s0] sm:$0xff]
    %v27 = vld [vmem:[%s0 + $0x8] sm:$0xff]
    %v28 = vld [vmem:[%s0 + $0x10] sm:$0xff]
    %v29 = vld [vmem:[%s0 + $0x18] sm:$0xff]
    %v30 = vld [vmem:[%s0 + $0x20] sm:$0xff]
    %v31 = vld [vmem:[#allocation2 + $0x268] sm:$0xff]
    %v32 = vld [vmem:[#allocation2 + $0x270] sm:$0xff]
    %v33 = vld [vmem:[#allocation2 + $0x278] sm:$0xff]
    %v34 = vld [vmem:[#allocation2 + $0x280] sm:$0xff]
    %v35 = vld [vmem:[#allocation2 + $0x288] sm:$0xff]
    %v36 = vld [vmem:[#allocation2 + $0x290] sm:$0xff]
    %v37 = vld [vmem:[#allocation2 + $0x298] sm:$0xff]
    %v38 = vld [vmem:[#allocation2 + $0x2a0] sm:$0xff]
    %v39 = vld [vmem:[#allocation2 + $0x2a8] sm:$0xff]
    %v40 = vld [vmem:[#allocation2 + $0x2b0] sm:$0xff]
    %v41 = vld [vmem:[#allocation2 + $0x240] sm:$0xff]
    %v42 = vld [vmem:[#allocation2 + $0x248] sm:$0xff]
    %v43 = vld [vmem:[#allocation2 + $0x250] sm:$0xff]
    %v44 = vld [vmem:[#allocation2 + $0x258] sm:$0xff]
    %v45 = vld [vmem:[#allocation2 + $0x260] sm:$0xff]
    %v46 = vld [vmem:[#allocation2 + $0x2b8] sm:$0xff]
    %v47 = vld [vmem:[#allocation2 + $0x2c0] sm:$0xff]
    %v48 = vld [vmem:[#allocation2 + $0x2c8] sm:$0xff]
    %v49 = vld [vmem:[#allocation2 + $0x2d0] sm:$0xff]
    %v50 = vld [vmem:[#allocation2 + $0x2d8] sm:$0xff]
    %v51 = vld [vmem:[#allocation2 + $0x40] sm:$0xff]
    %v52 = vld [vmem:[#allocation2 + $0x48] sm:$0xff]
    %v53 = vld [vmem:[#allocation2 + $0x50] sm:$0xff]
    %v54 = vld [vmem:[#allocation2 + $0x58] sm:$0xff]
    %v55 = vld [vmem:[#allocation2 + $0x60] sm:$0xff]
    %v56 = vld [vmem:[#allocation2 + $0x68] sm:$0xff]
    %v57 = vld [vmem:[#allocation2 + $0x70] sm:$0xff]
    %v58 = vld [vmem:[#allocation2 + $0x78] sm:$0xff]
    %vm59 = vcmask 326656
    %v61 = vsel %vm59, %v31, 0
    %v64 = vsel %vm59, %v32, 0
    %v67 = vsel %vm59, %v33, 0
    %v70 = vsel %vm59, %v34, 0
    %v73 = vsel %vm59, %v35, 0
    %75 = vmatprep.subr.mxu0 0.0
    %76 = vmatpush1.msra.mxu0 %v26
    %77 = vmatprep.subr.mxu0 0.0
    %78 = vmatpush1.msra.mxu0 %v27
    %79 = vmatprep.subr.mxu0 0.0
    %80 = vmatpush1.msra.mxu0 %v28
    %81 = vmatprep.subr.mxu0 0.0
    %82 = vmatpush1.msra.mxu0 %v29
    %83 = vmatprep.subr.mxu0 0.0
    %84 = vmatpush1.msra.mxu0 %v30
    %85 = vmatprep.subr.mxu0 0.0
    %86 = vmatpush1.msra.mxu0 0.0
    %87 = vmatprep.subr.mxu0 0.0
    %88 = vmatpush1.msra.mxu0 0.0
    %89 = vmatprep.subr.mxu0 0.0
    %90 = vmatpush1.msra.mxu0 0.0
    %91 = vmatprep.subr.mxu0 0.0
    %92 = vmatpush1.msra.mxu0 0.0
    %93 = vmatprep.subr.mxu0 0.0
    %94 = vmatpush1.msra.mxu0 0.0
    %95 = vmatprep.subr.mxu0 0.0
    %96 = vmatpush1.msra.mxu0 0.0
    %97 = vmatprep.subr.mxu0 0.0
    %98 = vmatpush1.msra.mxu0 0.0
    %99 = vmatprep.subr.mxu0 0.0
    %100 = vmatpush1.msra.mxu0 0.0
    %101 = vmatprep.subr.mxu0 0.0
    %102 = vmatpush1.msra.mxu0 0.0
    %103 = vmatprep.subr.mxu0 0.0
    %104 = vmatpush1.msra.mxu0 0.0
    %105 = vmatprep.subr.mxu0 0.0
    %106 = vmatpush1.msra.mxu0 0.0
    %107 = vmatprep.subr.mxu0 0.0
    %108 = vmatpush1.msra.mxu0 0.0
    %109 = vmatprep.subr.mxu0 0.0
    %110 = vmatpush1.msra.mxu0 0.0
    %111 = vmatprep.subr.mxu0 0.0
    %112 = vmatpush1.msra.mxu0 0.0
    %113 = vmatprep.subr.mxu0 0.0
    %114 = vmatpush1.msra.mxu0 0.0
    %115 = vmatprep.subr.mxu0 0.0
    %116 = vmatpush1.msra.mxu0 0.0
    %117 = vmatprep.subr.mxu0 0.0
    %118 = vmatpush1.msra.mxu0 0.0
    %119 = vmatprep.subr.mxu0 0.0
    %120 = vmatpush1.msra.mxu0 0.0
    %121 = vmatprep.subr.mxu0 0.0
    %122 = vmatpush1.msra.mxu0 0.0
    %123 = vmatprep.subr.mxu0 0.0
    %124 = vmatpush1.msra.mxu0 0.0
    %125 = vmatprep.subr.mxu0 0.0
    %126 = vmatpush1.msra.mxu0 0.0
    %127 = vmatprep.subr.mxu0 0.0
    %128 = vmatpush1.msra.mxu0 0.0
    %129 = vmatprep.subr.mxu0 0.0
    %130 = vmatpush1.msra.mxu0 0.0
    %131 = vmatprep.subr.mxu0 0.0
    %132 = vmatpush1.msra.mxu0 0.0
    %133 = vmatprep.subr.mxu0 0.0
    %134 = vmatpush1.msra.mxu0 0.0
    %135 = vmatprep.subr.mxu0 0.0
    %136 = vmatpush1.msra.mxu0 0.0
    %137 = vmatprep.subr.mxu0 0.0
    %138 = vmatpush1.msra.mxu0 0.0
    %139 = vmatprep.mubr.f32.mxu0 0.0
    %140 = vmatmul.mubr.f32.gmra.mrb[0].mxu0 %v61
    %v141 = vpop.f32.mrb[0].mxu0
    %v142 = vadd.f32 0.0, %v141
    %v143 = vpop.f32.mrb[0].mxu0
    %144 = vmatprep.mubr.f32.mxu0 0.0
    %145 = vmatmul.mubr.f32.gmra.mrb[0].mxu0 %v64
    %v146 = vpop.f32.mrb[0].mxu0
    %v147 = vadd.f32 0.0, %v146
    %v148 = vpop.f32.mrb[0].mxu0
    %149 = vmatprep.mubr.f32.mxu0 0.0
    %150 = vmatmul.mubr.f32.gmra.mrb[0].mxu0 %v67
    %v151 = vpop.f32.mrb[0].mxu0
    %v152 = vadd.f32 0.0, %v151
    %v153 = vpop.f32.mrb[0].mxu0
    %154 = vmatprep.mubr.f32.mxu0 0.0
    %155 = vmatmul.mubr.f32.gmra.mrb[0].mxu0 %v70
    %v156 = vpop.f32.mrb[0].mxu0
    %v157 = vadd.f32 0.0, %v156
    %v158 = vpop.f32.mrb[0].mxu0
    %159 = vmatprep.mubr.f32.mxu0 0.0
    %160 = vmatmul.mubr.f32.gmra.mrb[0].mxu0 %v73
    %v161 = vpop.f32.mrb[0].mxu0
    %v162 = vadd.f32 0.0, %v161
    %v163 = vpop.f32.mrb[0].mxu0
    %164 = vdwg.mxu0
    %v165 = vld [vmem:[#allocation2] sm:$0xff]
    %v166 = vld [vmem:[#allocation2 + $0x8] sm:$0xff]
    %v167 = vld [vmem:[#allocation2 + $0x10] sm:$0xff]
    %v168 = vld [vmem:[#allocation2 + $0x18] sm:$0xff]
    %v169 = vld [vmem:[#allocation2 + $0x20] sm:$0xff]
    %v170 = vld [vmem:[#allocation2 + $0x28] sm:$0xff]
    %v171 = vld [vmem:[#allocation2 + $0x30] sm:$0xff]
    %v172 = vld [vmem:[#allocation2 + $0x38] sm:$0xff]
    %vm173 = vcmask 523264
    %v175 = vsel %vm173, %v142, 0
    %v178 = vsel %vm173, %v147, 0
    %v181 = vsel %vm173, %v152, 0
    %v184 = vsel %vm173, %v157, 0
    %v187 = vsel %vm173, %v162, 0
    %189 = vmatprep.subr.mxu0 0.0
    %190 = vmatpush1.msra.mxu0 %v165
    %191 = vmatprep.subr.mxu0 0.0
    %192 = vmatpush1.msra.mxu0 %v166
    %193 = vmatprep.subr.mxu0 0.0
    %194 = vmatpush1.msra.mxu0 %v167
    %195 = vmatprep.subr.mxu0 0.0
    %196 = vmatpush1.msra.mxu0 %v168
    %197 = vmatprep.subr.mxu0 0.0
    %198 = vmatpush1.msra.mxu0 %v169
    %199 = vmatprep.subr.mxu0 0.0
    %200 = vmatpush1.msra.mxu0 %v170
    %201 = vmatprep.subr.mxu0 0.0
    %202 = vmatpush1.msra.mxu0 %v171
    %203 = vmatprep.subr.mxu0 0.0
    %204 = vmatpush1.msra.mxu0 %v172
    %205 = vmatprep.subr.mxu0 0.0
    %206 = vmatpush1.msra.mxu0 0.0
    %207 = vmatprep.subr.mxu0 0.0
    %208 = vmatpush1.msra.mxu0 0.0
    %209 = vmatprep.subr.mxu0 0.0
    %210 = vmatpush1.msra.mxu0 0.0
    %211 = vmatprep.subr.mxu0 0.0
    %212 = vmatpush1.msra.mxu0 0.0
    %213 = vmatprep.subr.mxu0 0.0
    %214 = vmatpush1.msra.mxu0 0.0
    %215 = vmatprep.subr.mxu0 0.0
    %216 = vmatpush1.msra.mxu0 0.0
    %217 = vmatprep.subr.mxu0 0.0
    %218 = vmatpush1.msra.mxu0 0.0
    %219 = vmatprep.subr.mxu0 0.0
    %220 = vmatpush1.msra.mxu0 0.0
    %221 = vmatprep.subr.mxu0 0.0
    %222 = vmatpush1.msra.mxu0 0.0
    %223 = vmatprep.subr.mxu0 0.0
    %224 = vmatpush1.msra.mxu0 0.0
    %225 = vmatprep.subr.mxu0 0.0
    %226 = vmatpush1.msra.mxu0 0.0
    %227 = vmatprep.subr.mxu0 0.0
    %228 = vmatpush1.msra.mxu0 0.0
    %229 = vmatprep.subr.mxu0 0.0
    %230 = vmatpush1.msra.mxu0 0.0
    %231 = vmatprep.subr.mxu0 0.0
    %232 = vmatpush1.msra.mxu0 0.0
    %233 = vmatprep.subr.mxu0 0.0
    %234 = vmatpush1.msra.mxu0 0.0
    %235 = vmatprep.subr.mxu0 0.0
    %236 = vmatpush1.msra.mxu0 0.0
    %237 = vmatprep.subr.mxu0 0.0
    %238 = vmatpush1.msra.mxu0 0.0
    %239 = vmatprep.subr.mxu0 0.0
    %240 = vmatpush1.msra.mxu0 0.0
    %241 = vmatprep.subr.mxu0 0.0
    %242 = vmatpush1.msra.mxu0 0.0
    %243 = vmatprep.subr.mxu0 0.0
    %244 = vmatpush1.msra.mxu0 0.0
    %245 = vmatprep.subr.mxu0 0.0
    %246 = vmatpush1.msra.mxu0 0.0
    %247 = vmatprep.subr.mxu0 0.0
    %248 = vmatpush1.msra.mxu0 0.0
    %249 = vmatprep.subr.mxu0 0.0
    %250 = vmatpush1.msra.mxu0 0.0
    %251 = vmatprep.subr.mxu0 0.0
    %252 = vmatpush1.msra.mxu0 0.0
    %253 = vmatprep.mubr.f32.mxu0 0.0
    %254 = vmatmul.mubr.f32.gmra.mrb[0].mxu0 %v175
    %v255 = vpop.f32.mrb[0].mxu0
    %v256 = vadd.f32 0.0, %v255
    %v257 = vpop.f32.mrb[0].mxu0
    %258 = vmatprep.mubr.f32.mxu0 0.0
    %259 = vmatmul.mubr.f32.gmra.mrb[0].mxu0 %v178
    %v260 = vpop.f32.mrb[0].mxu0
    %v261 = vadd.f32 0.0, %v260
    %v262 = vpop.f32.mrb[0].mxu0
    %263 = vmatprep.mubr.f32.mxu0 0.0
    %264 = vmatmul.mubr.f32.gmra.mrb[0].mxu0 %v181
    %v265 = vpop.f32.mrb[0].mxu0
    %v266 = vadd.f32 0.0, %v265
    %v267 = vpop.f32.mrb[0].mxu0
    %268 = vmatprep.mubr.f32.mxu0 0.0
    %269 = vmatmul.mubr.f32.gmra.mrb[0].mxu0 %v184
    %v270 = vpop.f32.mrb[0].mxu0
    %v271 = vadd.f32 0.0, %v270
    %v272 = vpop.f32.mrb[0].mxu0
    %273 = vmatprep.mubr.f32.mxu0 0.0
    %274 = vmatmul.mubr.f32.gmra.mrb[0].mxu0 %v187
    %v275 = vpop.f32.mrb[0].mxu0
    %v276 = vadd.f32 0.0, %v275
    %v277 = vpop.f32.mrb[0].mxu0
    %278 = vdwg.mxu0
    %v280 = vsel %vm173, %v26, 0
    %v283 = vsel %vm173, %v27, 0
    %v286 = vsel %vm173, %v28, 0
    %v289 = vsel %vm173, %v29, 0
    %v292 = vsel %vm173, %v30, 0
    %294 = vmatprep.subr.mxu0 0.0
    %295 = vmatpush1.msra.mxu0 %v51
    %296 = vmatprep.subr.mxu0 0.0
    %297 = vmatpush1.msra.mxu0 %v52
    %298 = vmatprep.subr.mxu0 0.0
    %299 = vmatpush1.msra.mxu0 %v53
    %300 = vmatprep.subr.mxu0 0.0
    %301 = vmatpush1.msra.mxu0 %v54
    %302 = vmatprep.subr.mxu0 0.0
    %303 = vmatpush1.msra.mxu0 %v55
    %304 = vmatprep.subr.mxu0 0.0
    %305 = vmatpush1.msra.mxu0 %v56
    %306 = vmatprep.subr.mxu0 0.0
    %307 = vmatpush1.msra.mxu0 %v57
    %308 = vmatprep.subr.mxu0 0.0
    %309 = vmatpush1.msra.mxu0 %v58
    %310 = vmatprep.subr.mxu0 0.0
    %311 = vmatpush1.msra.mxu0 0.0
    %312 = vmatprep.subr.mxu0 0.0
    %313 = vmatpush1.msra.mxu0 0.0
    %314 = vmatprep.subr.mxu0 0.0
    %315 = vmatpush1.msra.mxu0 0.0
    %316 = vmatprep.subr.mxu0 0.0
    %317 = vmatpush1.msra.mxu0 0.0
    %318 = vmatprep.subr.mxu0 0.0
    %319 = vmatpush1.msra.mxu0 0.0
    %320 = vmatprep.subr.mxu0 0.0
    %321 = vmatpush1.msra.mxu0 0.0
    %322 = vmatprep.subr.mxu0 0.0
    %323 = vmatpush1.msra.mxu0 0.0
    %324 = vmatprep.subr.mxu0 0.0
    %325 = vmatpush1.msra.mxu0 0.0
    %326 = vmatprep.subr.mxu0 0.0
    %327 = vmatpush1.msra.mxu0 0.0
    %328 = vmatprep.subr.mxu0 0.0
    %329 = vmatpush1.msra.mxu0 0.0
    %330 = vmatprep.subr.mxu0 0.0
    %331 = vmatpush1.msra.mxu0 0.0
    %332 = vmatprep.subr.mxu0 0.0
    %333 = vmatpush1.msra.mxu0 0.0
    %334 = vmatprep.subr.mxu0 0.0
    %335 = vmatpush1.msra.mxu0 0.0
    %336 = vmatprep.subr.mxu0 0.0
    %337 = vmatpush1.msra.mxu0 0.0
    %338 = vmatprep.subr.mxu0 0.0
    %339 = vmatpush1.msra.mxu0 0.0
    %340 = vmatprep.subr.mxu0 0.0
    %341 = vmatpush1.msra.mxu0 0.0
    %342 = vmatprep.subr.mxu0 0.0
    %343 = vmatpush1.msra.mxu0 0.0
    %344 = vmatprep.subr.mxu0 0.0
    %345 = vmatpush1.msra.mxu0 0.0
    %346 = vmatprep.subr.mxu0 0.0
    %347 = vmatpush1.msra.mxu0 0.0
    %348 = vmatprep.subr.mxu0 0.0
    %349 = vmatpush1.msra.mxu0 0.0
    %350 = vmatprep.subr.mxu0 0.0
    %351 = vmatpush1.msra.mxu0 0.0
    %352 = vmatprep.subr.mxu0 0.0
    %353 = vmatpush1.msra.mxu0 0.0
    %354 = vmatprep.subr.mxu0 0.0
    %355 = vmatpush1.msra.mxu0 0.0
    %356 = vmatprep.subr.mxu0 0.0
    %357 = vmatpush1.msra.mxu0 0.0
    %358 = vmatprep.mubr.f32.mxu0 0.0
    %359 = vmatmul.mubr.f32.gmra.mrb[0].mxu0 %v280
    %v360 = vpop.f32.mrb[0].mxu0
    %v361 = vadd.f32 %v256, %v360
    %v362 = vpop.f32.mrb[0].mxu0
    %363 = vmatprep.mubr.f32.mxu0 0.0
    %364 = vmatmul.mubr.f32.gmra.mrb[0].mxu0 %v283
    %v365 = vpop.f32.mrb[0].mxu0
    %v366 = vadd.f32 %v261, %v365
    %v367 = vpop.f32.mrb[0].mxu0
    %368 = vmatprep.mubr.f32.mxu0 0.0
    %369 = vmatmul.mubr.f32.gmra.mrb[0].mxu0 %v286
    %v370 = vpop.f32.mrb[0].mxu0
    %v371 = vadd.f32 %v266, %v370
    %v372 = vpop.f32.mrb[0].mxu0
    %373 = vmatprep.mubr.f32.mxu0 0.0
    %374 = vmatmul.mubr.f32.gmra.mrb[0].mxu0 %v289
    %v375 = vpop.f32.mrb[0].mxu0
    %v376 = vadd.f32 %v271, %v375
    %v377 = vpop.f32.mrb[0].mxu0
    %378 = vmatprep.mubr.f32.mxu0 0.0
    %379 = vmatmul.mubr.f32.gmra.mrb[0].mxu0 %v292
    %v380 = vpop.f32.mrb[0].mxu0
    %v381 = vadd.f32 %v276, %v380
    %v382 = vpop.f32.mrb[0].mxu0
    %383 = vdwg.mxu0
    %v385 = vsel %vm59, %v36, 0
    %v388 = vsel %vm59, %v37, 0
    %v391 = vsel %vm59, %v38, 0
    %v394 = vsel %vm59, %v39, 0
    %v397 = vsel %vm59, %v40, 0
    %399 = vmatprep.subr.mxu0 0.0
    %400 = vmatpush1.msra.mxu0 %v26
    %401 = vmatprep.subr.mxu0 0.0
    %402 = vmatpush1.msra.mxu0 %v27
    %403 = vmatprep.subr.mxu0 0.0
    %404 = vmatpush1.msra.mxu0 %v28
    %405 = vmatprep.subr.mxu0 0.0
    %406 = vmatpush1.msra.mxu0 %v29
    %407 = vmatprep.subr.mxu0 0.0
    %408 = vmatpush1.msra.mxu0 %v30
    %409 = vmatprep.subr.mxu0 0.0
    %410 = vmatpush1.msra.mxu0 0.0
    %411 = vmatprep.subr.mxu0 0.0
    %412 = vmatpush1.msra.mxu0 0.0
    %413 = vmatprep.subr.mxu0 0.0
    %414 = vmatpush1.msra.mxu0 0.0
    %415 = vmatprep.subr.mxu0 0.0
    %416 = vmatpush1.msra.mxu0 0.0
    %417 = vmatprep.subr.mxu0 0.0
    %418 = vmatpush1.msra.mxu0 0.0
    %419 = vmatprep.subr.mxu0 0.0
    %420 = vmatpush1.msra.mxu0 0.0
    %421 = vmatprep.subr.mxu0 0.0
    %422 = vmatpush1.msra.mxu0 0.0
    %423 = vmatprep.subr.mxu0 0.0
    %424 = vmatpush1.msra.mxu0 0.0
    %425 = vmatprep.subr.mxu0 0.0
    %426 = vmatpush1.msra.mxu0 0.0
    %427 = vmatprep.subr.mxu0 0.0
    %428 = vmatpush1.msra.mxu0 0.0
    %429 = vmatprep.subr.mxu0 0.0
    %430 = vmatpush1.msra.mxu0 0.0
    %431 = vmatprep.subr.mxu0 0.0
    %432 = vmatpush1.msra.mxu0 0.0
    %433 = vmatprep.subr.mxu0 0.0
    %434 = vmatpush1.msra.mxu0 0.0
    %435 = vmatprep.subr.mxu0 0.0
    %436 = vmatpush1.msra.mxu0 0.0
    %437 = vmatprep.subr.mxu0 0.0
    %438 = vmatpush1.msra.mxu0 0.0
    %439 = vmatprep.subr.mxu0 0.0
    %440 = vmatpush1.msra.mxu0 0.0
    %441 = vmatprep.subr.mxu0 0.0
    %442 = vmatpush1.msra.mxu0 0.0
    %443 = vmatprep.subr.mxu0 0.0
    %444 = vmatpush1.msra.mxu0 0.0
    %445 = vmatprep.subr.mxu0 0.0
    %446 = vmatpush1.msra.mxu0 0.0
    %447 = vmatprep.subr.mxu0 0.0
    %448 = vmatpush1.msra.mxu0 0.0
    %449 = vmatprep.subr.mxu0 0.0
    %450 = vmatpush1.msra.mxu0 0.0
    %451 = vmatprep.subr.mxu0 0.0
    %452 = vmatpush1.msra.mxu0 0.0
    %453 = vmatprep.subr.mxu0 0.0
    %454 = vmatpush1.msra.mxu0 0.0
    %455 = vmatprep.subr.mxu0 0.0
    %456 = vmatpush1.msra.mxu0 0.0
    %457 = vmatprep.subr.mxu0 0.0
    %458 = vmatpush1.msra.mxu0 0.0
    %459 = vmatprep.subr.mxu0 0.0
    %460 = vmatpush1.msra.mxu0 0.0
    %461 = vmatprep.subr.mxu0 0.0
    %462 = vmatpush1.msra.mxu0 0.0
    %463 = vmatprep.mubr.f32.mxu0 0.0
    %464 = vmatmul.mubr.f32.gmra.mrb[0].mxu0 %v385
    %v465 = vpop.f32.mrb[0].mxu0
    %v466 = vadd.f32 0.0, %v465
    %v467 = vpop.f32.mrb[0].mxu0
    %468 = vmatprep.mubr.f32.mxu0 0.0
    %469 = vmatmul.mubr.f32.gmra.mrb[0].mxu0 %v388
    %v470 = vpop.f32.mrb[0].mxu0
    %v471 = vadd.f32 0.0, %v470
    %v472 = vpop.f32.mrb[0].mxu0
    %473 = vmatprep.mubr.f32.mxu0 0.0
    %474 = vmatmul.mubr.f32.gmra.mrb[0].mxu0 %v391
    %v475 = vpop.f32.mrb[0].mxu0
    %v476 = vadd.f32 0.0, %v475
    %v477 = vpop.f32.mrb[0].mxu0
    %478 = vmatprep.mubr.f32.mxu0 0.0
    %479 = vmatmul.mubr.f32.gmra.mrb[0].mxu0 %v394
    %v480 = vpop.f32.mrb[0].mxu0
    %v481 = vadd.f32 0.0, %v480
    %v482 = vpop.f32.mrb[0].mxu0
    %483 = vmatprep.mubr.f32.mxu0 0.0
    %484 = vmatmul.mubr.f32.gmra.mrb[0].mxu0 %v397
    %v485 = vpop.f32.mrb[0].mxu0
    %v486 = vadd.f32 0.0, %v485
    %v487 = vpop.f32.mrb[0].mxu0
    %488 = vdwg.mxu0
    %v489 = vld [vmem:[#allocation2 + $0x80] sm:$0xff]
    %v490 = vld [vmem:[#allocation2 + $0x88] sm:$0xff]
    %v491 = vld [vmem:[#allocation2 + $0x90] sm:$0xff]
    %v492 = vld [vmem:[#allocation2 + $0x98] sm:$0xff]
    %v493 = vld [vmem:[#allocation2 + $0xa0] sm:$0xff]
    %v494 = vld [vmem:[#allocation2 + $0xa8] sm:$0xff]
    %v495 = vld [vmem:[#allocation2 + $0xb0] sm:$0xff]
    %v496 = vld [vmem:[#allocation2 + $0xb8] sm:$0xff]
    %v498 = vsel %vm173, %v466, 0
    %v501 = vsel %vm173, %v471, 0
    %v504 = vsel %vm173, %v476, 0
    %v507 = vsel %vm173, %v481, 0
    %v510 = vsel %vm173, %v486, 0
    %512 = vmatprep.subr.mxu0 0.0
    %513 = vmatpush1.msra.mxu0 %v489
    %514 = vmatprep.subr.mxu0 0.0
    %515 = vmatpush1.msra.mxu0 %v490
    %516 = vmatprep.subr.mxu0 0.0
    %517 = vmatpush1.msra.mxu0 %v491
    %518 = vmatprep.subr.mxu0 0.0
    %519 = vmatpush1.msra.mxu0 %v492
    %520 = vmatprep.subr.mxu0 0.0
    %521 = vmatpush1.msra.mxu0 %v493
    %522 = vmatprep.subr.mxu0 0.0
    %523 = vmatpush1.msra.mxu0 %v494
    %524 = vmatprep.subr.mxu0 0.0
    %525 = vmatpush1.msra.mxu0 %v495
    %526 = vmatprep.subr.mxu0 0.0
    %527 = vmatpush1.msra.mxu0 %v496
    %528 = vmatprep.subr.mxu0 0.0
    %529 = vmatpush1.msra.mxu0 0.0
    %530 = vmatprep.subr.mxu0 0.0
    %531 = vmatpush1.msra.mxu0 0.0
    %532 = vmatprep.subr.mxu0 0.0
    %533 = vmatpush1.msra.mxu0 0.0
    %534 = vmatprep.subr.mxu0 0.0
    %535 = vmatpush1.msra.mxu0 0.0
    %536 = vmatprep.subr.mxu0 0.0
    %537 = vmatpush1.msra.mxu0 0.0
    %538 = vmatprep.subr.mxu0 0.0
    %539 = vmatpush1.msra.mxu0 0.0
    %540 = vmatprep.subr.mxu0 0.0
    %541 = vmatpush1.msra.mxu0 0.0
    %542 = vmatprep.subr.mxu0 0.0
    %543 = vmatpush1.msra.mxu0 0.0
    %544 = vmatprep.subr.mxu0 0.0
    %545 = vmatpush1.msra.mxu0 0.0
    %546 = vmatprep.subr.mxu0 0.0
    %547 = vmatpush1.msra.mxu0 0.0
    %548 = vmatprep.subr.mxu0 0.0
    %549 = vmatpush1.msra.mxu0 0.0
    %550 = vmatprep.subr.mxu0 0.0
    %551 = vmatpush1.msra.mxu0 0.0
    %552 = vmatprep.subr.mxu0 0.0
    %553 = vmatpush1.msra.mxu0 0.0
    %554 = vmatprep.subr.mxu0 0.0
    %555 = vmatpush1.msra.mxu0 0.0
    %556 = vmatprep.subr.mxu0 0.0
    %557 = vmatpush1.msra.mxu0 0.0
    %558 = vmatprep.subr.mxu0 0.0
    %559 = vmatpush1.msra.mxu0 0.0
    %560 = vmatprep.subr.mxu0 0.0
    %561 = vmatpush1.msra.mxu0 0.0
    %562 = vmatprep.subr.mxu0 0.0
    %563 = vmatpush1.msra.mxu0 0.0
    %564 = vmatprep.subr.mxu0 0.0
    %565 = vmatpush1.msra.mxu0 0.0
    %566 = vmatprep.subr.mxu0 0.0
    %567 = vmatpush1.msra.mxu0 0.0
    %568 = vmatprep.subr.mxu0 0.0
    %569 = vmatpush1.msra.mxu0 0.0
    %570 = vmatprep.subr.mxu0 0.0
    %571 = vmatpush1.msra.mxu0 0.0
    %572 = vmatprep.subr.mxu0 0.0
    %573 = vmatpush1.msra.mxu0 0.0
    %574 = vmatprep.subr.mxu0 0.0
    %575 = vmatpush1.msra.mxu0 0.0
    %576 = vmatprep.mubr.f32.mxu0 0.0
    %577 = vmatmul.mubr.f32.gmra.mrb[0].mxu0 %v498
    %v578 = vpop.f32.mrb[0].mxu0
    %v579 = vadd.f32 0.0, %v578
    %v580 = vpop.f32.mrb[0].mxu0
    %581 = vmatprep.mubr.f32.mxu0 0.0
    %582 = vmatmul.mubr.f32.gmra.mrb[0].mxu0 %v501
    %v583 = vpop.f32.mrb[0].mxu0
    %v584 = vadd.f32 0.0, %v583
    %v585 = vpop.f32.mrb[0].mxu0
    %586 = vmatprep.mubr.f32.mxu0 0.0
    %587 = vmatmul.mubr.f32.gmra.mrb[0].mxu0 %v504
    %v588 = vpop.f32.mrb[0].mxu0
    %v589 = vadd.f32 0.0, %v588
    %v590 = vpop.f32.mrb[0].mxu0
    %591 = vmatprep.mubr.f32.mxu0 0.0
    %592 = vmatmul.mubr.f32.gmra.mrb[0].mxu0 %v507
    %v593 = vpop.f32.mrb[0].mxu0
    %v594 = vadd.f32 0.0, %v593
    %v595 = vpop.f32.mrb[0].mxu0
    %596 = vmatprep.mubr.f32.mxu0 0.0
    %597 = vmatmul.mubr.f32.gmra.mrb[0].mxu0 %v510
    %v598 = vpop.f32.mrb[0].mxu0
    %v599 = vadd.f32 0.0, %v598
    %v600 = vpop.f32.mrb[0].mxu0
    %601 = vdwg.mxu0
    %v602 = vadd.f32 %v361, %v579
    %v603 = vadd.f32 %v366, %v584
    %v604 = vadd.f32 %v371, %v589
    %v605 = vadd.f32 %v376, %v594
    %v606 = vadd.f32 %v381, %v599
    %v607 = vld [vmem:[#allocation2 + $0x360] sm:$0x7]
    %v608 = vlaneseq
    %v609 = vshrl.u32 %v608, 7
    %v610 = vsub.s32 0, %v609
    %v611 = vrot.slane %v607, %v610
    %v612 = vadd.f32 %v602, %v611
    %v613 = vadd.f32 %v603, %v611
    %v614 = vadd.f32 %v604, %v611
    %v615 = vadd.f32 %v605, %v611
    %v616 = vadd.f32 %v606, %v611
    %v617 = vmax.f32 %v612, 0.0
    %v618 = vmax.f32 %v613, 0.0
    %v619 = vmax.f32 %v614, 0.0
    %v620 = vmax.f32 %v615, 0.0
    %v621 = vmax.f32 %v616, 0.0
    %v622 = vlaneseq
    %v623 = vshrl.u32 %v622, 7
    %v624 = vsub.s32 1, %v623
    %v625 = vrot.slane %v607, %v624
    %v626 = vmul.f32 %v617, %v625
    %v627 = vmul.f32 %v618, %v625
    %v628 = vmul.f32 %v619, %v625
    %v629 = vmul.f32 %v620, %v625
    %v630 = vmul.f32 %v621, %v625
    %v631 = vlaneseq
    %v632 = vshrl.u32 %v631, 7
    %v633 = vsub.s32 2, %v632
    %v634 = vrot.slane %v607, %v633
    %v635 = vadd.f32 %v626, %v634
    %v636 = vadd.f32 %v627, %v634
    %v637 = vadd.f32 %v628, %v634
    %v638 = vadd.f32 %v629, %v634
    %v639 = vadd.f32 %v630, %v634
    %640 = vmatprep.subr.mxu0 0.0
    %641 = vmatpush1.msra.mxu0 %v635
    %642 = vmatprep.subr.mxu0 0.0
    %643 = vmatpush1.msra.mxu0 %v636
    %644 = vmatprep.subr.mxu0 0.0
    %645 = vmatpush1.msra.mxu0 %v637
    %646 = vmatprep.subr.mxu0 0.0
    %647 = vmatpush1.msra.mxu0 %v638
    %648 = vmatprep.subr.mxu0 0.0
    %649 = vmatpush1.msra.mxu0 %v639
    %650 = vmatprep.subr.mxu0 0.0
    %651 = vmatpush1.msra.mxu0 0.0
    %652 = vmatprep.subr.mxu0 0.0
    %653 = vmatpush1.msra.mxu0 0.0
    %654 = vmatprep.subr.mxu0 0.0
    %655 = vmatpush1.msra.mxu0 0.0
    %656 = vmatprep.subr.mxu0 0.0
    %657 = vmatpush1.msra.mxu0 0.0
    %658 = vmatprep.subr.mxu0 0.0
    %659 = vmatpush1.msra.mxu0 0.0
    %660 = vmatprep.subr.mxu0 0.0
    %661 = vmatpush1.msra.mxu0 0.0
    %662 = vmatprep.subr.mxu0 0.0
    %663 = vmatpush1.msra.mxu0 0.0
    %664 = vmatprep.subr.mxu0 0.0
    %665 = vmatpush1.msra.mxu0 0.0
    %666 = vmatprep.subr.mxu0 0.0
    %667 = vmatpush1.msra.mxu0 0.0
    %668 = vmatprep.subr.mxu0 0.0
    %669 = vmatpush1.msra.mxu0 0.0
    %670 = vmatprep.subr.mxu0 0.0
    %671 = vmatpush1.msra.mxu0 0.0
    %672 = vmatprep.subr.mxu0 0.0
    %673 = vmatpush1.msra.mxu0 0.0
    %674 = vmatprep.subr.mxu0 0.0
    %675 = vmatpush1.msra.mxu0 0.0
    %676 = vmatprep.subr.mxu0 0.0
    %677 = vmatpush1.msra.mxu0 0.0
    %678 = vmatprep.subr.mxu0 0.0
    %679 = vmatpush1.msra.mxu0 0.0
    %680 = vmatprep.subr.mxu0 0.0
    %681 = vmatpush1.msra.mxu0 0.0
    %682 = vmatprep.subr.mxu0 0.0
    %683 = vmatpush1.msra.mxu0 0.0
    %684 = vmatprep.subr.mxu0 0.0
    %685 = vmatpush1.msra.mxu0 0.0
    %686 = vmatprep.subr.mxu0 0.0
    %687 = vmatpush1.msra.mxu0 0.0
    %688 = vmatprep.subr.mxu0 0.0
    %689 = vmatpush1.msra.mxu0 0.0
    %690 = vmatprep.subr.mxu0 0.0
    %691 = vmatpush1.msra.mxu0 0.0
    %692 = vmatprep.subr.mxu0 0.0
    %693 = vmatpush1.msra.mxu0 0.0
    %694 = vmatprep.subr.mxu0 0.0
    %695 = vmatpush1.msra.mxu0 0.0
    %696 = vmatprep.subr.mxu0 0.0
    %697 = vmatpush1.msra.mxu0 0.0
    %698 = vmatprep.subr.mxu0 0.0
    %699 = vmatpush1.msra.mxu0 0.0
    %700 = vmatprep.subr.mxu0 0.0
    %701 = vmatpush1.msra.mxu0 0.0
    %702 = vmatprep.subr.mxu0 0.0
    %703 = vmatpush1.msra.mxu0 0.0
    %704 = vmatprep.mubr.f32.mxu0 0.0
    %705 = vmatmul.mubr.f32.gmra.mrb[0].mxu0 %v385
    %v706 = vpop.f32.mrb[0].mxu0
    %v707 = vadd.f32 0.0, %v706
    %v708 = vpop.f32.mrb[0].mxu0
    %709 = vmatprep.mubr.f32.mxu0 0.0
    %710 = vmatmul.mubr.f32.gmra.mrb[0].mxu0 %v388
    %v711 = vpop.f32.mrb[0].mxu0
    %v712 = vadd.f32 0.0, %v711
    %v713 = vpop.f32.mrb[0].mxu0
    %714 = vmatprep.mubr.f32.mxu0 0.0
    %715 = vmatmul.mubr.f32.gmra.mrb[0].mxu0 %v391
    %v716 = vpop.f32.mrb[0].mxu0
    %v717 = vadd.f32 0.0, %v716
    %v718 = vpop.f32.mrb[0].mxu0
    %719 = vmatprep.mubr.f32.mxu0 0.0
    %720 = vmatmul.mubr.f32.gmra.mrb[0].mxu0 %v394
    %v721 = vpop.f32.mrb[0].mxu0
    %v722 = vadd.f32 0.0, %v721
    %v723 = vpop.f32.mrb[0].mxu0
    %724 = vmatprep.mubr.f32.mxu0 0.0
    %725 = vmatmul.mubr.f32.gmra.mrb[0].mxu0 %v397
    %v726 = vpop.f32.mrb[0].mxu0
    %v727 = vadd.f32 0.0, %v726
    %v728 = vpop.f32.mrb[0].mxu0
    %729 = vdwg.mxu0
    %v730 = vmax.f32 %v635, %v707
    %v731 = vmax.f32 %v636, %v712
    %v732 = vmax.f32 %v637, %v717
    %v733 = vmax.f32 %v638, %v722
    %v734 = vmax.f32 %v639, %v727
    %v735 = vld [vmem:[#allocation2 + $0x2e0] sm:$0xff]
    %v736 = vld [vmem:[#allocation2 + $0x2e8] sm:$0xff]
    %v737 = vld [vmem:[#allocation2 + $0x2f0] sm:$0xff]
    %v738 = vld [vmem:[#allocation2 + $0x2f8] sm:$0xff]
    %v739 = vld [vmem:[#allocation2 + $0x300] sm:$0xff]
    %v740 = vld [vmem:[#allocation2 + $0x308] sm:$0xff]
    %v741 = vld [vmem:[#allocation2 + $0x310] sm:$0xff]
    %v742 = vld [vmem:[#allocation2 + $0x318] sm:$0xff]
    %v743 = vld [vmem:[#allocation2 + $0x320] sm:$0xff]
    %v744 = vld [vmem:[#allocation2 + $0x328] sm:$0xff]
    %v745 = vld [vmem:[#allocation2 + $0x330] sm:$0xff]
    %v746 = vld [vmem:[#allocation2 + $0x338] sm:$0xff]
    %v747 = vld [vmem:[#allocation2 + $0x340] sm:$0xff]
    %v748 = vld [vmem:[#allocation2 + $0x348] sm:$0xff]
    %v749 = vld [vmem:[#allocation2 + $0x350] sm:$0xff]
    %v750 = vld [vmem:[#allocation2 + $0x358] sm:$0xff]
    %751 = vmatprep.subr.mxu0 0.0
    %752 = vmatpush1.msra.mxu0 %v735
    %753 = vmatprep.subr.mxu0 0.0
    %754 = vmatpush1.msra.mxu0 %v736
    %755 = vmatprep.subr.mxu0 0.0
    %756 = vmatpush1.msra.mxu0 %v737
    %757 = vmatprep.subr.mxu0 0.0
    %758 = vmatpush1.msra.mxu0 %v738
    %759 = vmatprep.subr.mxu0 0.0
    %760 = vmatpush1.msra.mxu0 %v739
    %761 = vmatprep.subr.mxu0 0.0
    %762 = vmatpush1.msra.mxu0 %v740
    %763 = vmatprep.subr.mxu0 0.0
    %764 = vmatpush1.msra.mxu0 %v741
    %765 = vmatprep.subr.mxu0 0.0
    %766 = vmatpush1.msra.mxu0 %v742
    %767 = vmatprep.subr.mxu0 0.0
    %768 = vmatpush1.msra.mxu0 %v743
    %769 = vmatprep.subr.mxu0 0.0
    %770 = vmatpush1.msra.mxu0 %v744
    %771 = vmatprep.subr.mxu0 0.0
    %772 = vmatpush1.msra.mxu0 %v745
    %773 = vmatprep.subr.mxu0 0.0
    %774 = vmatpush1.msra.mxu0 %v746
    %775 = vmatprep.subr.mxu0 0.0
    %776 = vmatpush1.msra.mxu0 %v747
    %777 = vmatprep.subr.mxu0 0.0
    %778 = vmatpush1.msra.mxu0 %v748
    %779 = vmatprep.subr.mxu0 0.0
    %780 = vmatpush1.msra.mxu0 %v749
    %781 = vmatprep.subr.mxu0 0.0
    %782 = vmatpush1.msra.mxu0 %v750
    %783 = vmatprep.subr.mxu0 0.0
    %784 = vmatpush1.msra.mxu0 0.0
    %785 = vmatprep.subr.mxu0 0.0
    %786 = vmatpush1.msra.mxu0 0.0
    %787 = vmatprep.subr.mxu0 0.0
    %788 = vmatpush1.msra.mxu0 0.0
    %789 = vmatprep.subr.mxu0 0.0
    %790 = vmatpush1.msra.mxu0 0.0
    %791 = vmatprep.subr.mxu0 0.0
    %792 = vmatpush1.msra.mxu0 0.0
    %793 = vmatprep.subr.mxu0 0.0
    %794 = vmatpush1.msra.mxu0 0.0
    %795 = vmatprep.subr.mxu0 0.0
    %796 = vmatpush1.msra.mxu0 0.0
    %797 = vmatprep.subr.mxu0 0.0
    %798 = vmatpush1.msra.mxu0 0.0
    %799 = vmatprep.subr.mxu0 0.0
    %800 = vmatpush1.msra.mxu0 0.0
    %801 = vmatprep.subr.mxu0 0.0
    %802 = vmatpush1.msra.mxu0 0.0
    %803 = vmatprep.subr.mxu0 0.0
    %804 = vmatpush1.msra.mxu0 0.0
    %805 = vmatprep.subr.mxu0 0.0
    %806 = vmatpush1.msra.mxu0 0.0
    %807 = vmatprep.subr.mxu0 0.0
    %808 = vmatpush1.msra.mxu0 0.0
    %809 = vmatprep.subr.mxu0 0.0
    %810 = vmatpush1.msra.mxu0 0.0
    %811 = vmatprep.subr.mxu0 0.0
    %812 = vmatpush1.msra.mxu0 0.0
    %813 = vmatprep.subr.mxu0 0.0
    %814 = vmatpush1.msra.mxu0 0.0
    %815 = vmatprep.mubr.f32.mxu0 0.0
    %816 = vmatmul.mubr.f32.gmra.mrb[0].mxu0 %v730
    %v817 = vpop.f32.mrb[0].mxu0
    %v818 = vadd.f32 0.0, %v817
    %v819 = vpop.f32.mrb[0].mxu0
    %820 = vmatprep.mubr.f32.mxu0 0.0
    %821 = vmatmul.mubr.f32.gmra.mrb[0].mxu0 %v731
    %v822 = vpop.f32.mrb[0].mxu0
    %v823 = vadd.f32 0.0, %v822
    %v824 = vpop.f32.mrb[0].mxu0
    %825 = vmatprep.mubr.f32.mxu0 0.0
    %826 = vmatmul.mubr.f32.gmra.mrb[0].mxu0 %v732
    %v827 = vpop.f32.mrb[0].mxu0
    %v828 = vadd.f32 0.0, %v827
    %v829 = vpop.f32.mrb[0].mxu0
    %830 = vmatprep.mubr.f32.mxu0 0.0
    %831 = vmatmul.mubr.f32.gmra.mrb[0].mxu0 %v733
    %v832 = vpop.f32.mrb[0].mxu0
    %v833 = vadd.f32 0.0, %v832
    %v834 = vpop.f32.mrb[0].mxu0
    %835 = vmatprep.mubr.f32.mxu0 0.0
    %836 = vmatmul.mubr.f32.gmra.mrb[0].mxu0 %v734
    %v837 = vpop.f32.mrb[0].mxu0
    %v838 = vadd.f32 0.0, %v837
    %v839 = vpop.f32.mrb[0].mxu0
    %840 = vdwg.mxu0
    %v841 = vmax.f32 %v730, %v818
    %v842 = vmax.f32 %v731, %v823
    %v843 = vmax.f32 %v732, %v828
    %v844 = vmax.f32 %v733, %v833
    %v845 = vmax.f32 %v734, %v838
    %v846 = vld [vmem:[#allocation2 + $0x140] sm:$0xff]
    %v847 = vld [vmem:[#allocation2 + $0x148] sm:$0xff]
    %v848 = vld [vmem:[#allocation2 + $0x150] sm:$0xff]
    %v849 = vld [vmem:[#allocation2 + $0x158] sm:$0xff]
    %v850 = vld [vmem:[#allocation2 + $0x160] sm:$0xff]
    %v851 = vld [vmem:[#allocation2 + $0x168] sm:$0xff]
    %v852 = vld [vmem:[#allocation2 + $0x170] sm:$0xff]
    %v853 = vld [vmem:[#allocation2 + $0x178] sm:$0xff]
    %v854 = vld [vmem:[#allocation2 + $0x180] sm:$0xff]
    %v855 = vld [vmem:[#allocation2 + $0x188] sm:$0xff]
    %v856 = vld [vmem:[#allocation2 + $0x190] sm:$0xff]
    %v857 = vld [vmem:[#allocation2 + $0x198] sm:$0xff]
    %v858 = vld [vmem:[#allocation2 + $0x1a0] sm:$0xff]
    %v859 = vld [vmem:[#allocation2 + $0x1a8] sm:$0xff]
    %v860 = vld [vmem:[#allocation2 + $0x1b0] sm:$0xff]
    %v861 = vld [vmem:[#allocation2 + $0x1b8] sm:$0xff]
    %v863 = vsel %vm59, %v41, 0
    %v866 = vsel %vm59, %v42, 0
    %v869 = vsel %vm59, %v43, 0
    %v872 = vsel %vm59, %v44, 0
    %v875 = vsel %vm59, %v45, 0
    %877 = vmatprep.subr.mxu0 0.0
    %878 = vmatpush1.msra.mxu0 %v841
    %879 = vmatprep.subr.mxu0 0.0
    %880 = vmatpush1.msra.mxu0 %v842
    %881 = vmatprep.subr.mxu0 0.0
    %882 = vmatpush1.msra.mxu0 %v843
    %883 = vmatprep.subr.mxu0 0.0
    %884 = vmatpush1.msra.mxu0 %v844
    %885 = vmatprep.subr.mxu0 0.0
    %886 = vmatpush1.msra.mxu0 %v845
    %887 = vmatprep.subr.mxu0 0.0
    %888 = vmatpush1.msra.mxu0 0.0
    %889 = vmatprep.subr.mxu0 0.0
    %890 = vmatpush1.msra.mxu0 0.0
    %891 = vmatprep.subr.mxu0 0.0
    %892 = vmatpush1.msra.mxu0 0.0
    %893 = vmatprep.subr.mxu0 0.0
    %894 = vmatpush1.msra.mxu0 0.0
    %895 = vmatprep.subr.mxu0 0.0
    %896 = vmatpush1.msra.mxu0 0.0
    %897 = vmatprep.subr.mxu0 0.0
    %898 = vmatpush1.msra.mxu0 0.0
    %899 = vmatprep.subr.mxu0 0.0
    %900 = vmatpush1.msra.mxu0 0.0
    %901 = vmatprep.subr.mxu0 0.0
    %902 = vmatpush1.msra.mxu0 0.0
    %903 = vmatprep.subr.mxu0 0.0
    %904 = vmatpush1.msra.mxu0 0.0
    %905 = vmatprep.subr.mxu0 0.0
    %906 = vmatpush1.msra.mxu0 0.0
    %907 = vmatprep.subr.mxu0 0.0
    %908 = vmatpush1.msra.mxu0 0.0
    %909 = vmatprep.subr.mxu0 0.0
    %910 = vmatpush1.msra.mxu0 0.0
    %911 = vmatprep.subr.mxu0 0.0
    %912 = vmatpush1.msra.mxu0 0.0
    %913 = vmatprep.subr.mxu0 0.0
    %914 = vmatpush1.msra.mxu0 0.0
    %915 = vmatprep.subr.mxu0 0.0
    %916 = vmatpush1.msra.mxu0 0.0
    %917 = vmatprep.subr.mxu0 0.0
    %918 = vmatpush1.msra.mxu0 0.0
    %919 = vmatprep.subr.mxu0 0.0
    %920 = vmatpush1.msra.mxu0 0.0
    %921 = vmatprep.subr.mxu0 0.0
    %922 = vmatpush1.msra.mxu0 0.0
    %923 = vmatprep.subr.mxu0 0.0
    %924 = vmatpush1.msra.mxu0 0.0
    %925 = vmatprep.subr.mxu0 0.0
    %926 = vmatpush1.msra.mxu0 0.0
    %927 = vmatprep.subr.mxu0 0.0
    %928 = vmatpush1.msra.mxu0 0.0
    %929 = vmatprep.subr.mxu0 0.0
    %930 = vmatpush1.msra.mxu0 0.0
    %931 = vmatprep.subr.mxu0 0.0
    %932 = vmatpush1.msra.mxu0 0.0
    %933 = vmatprep.subr.mxu0 0.0
    %934 = vmatpush1.msra.mxu0 0.0
    %935 = vmatprep.subr.mxu0 0.0
    %936 = vmatpush1.msra.mxu0 0.0
    %937 = vmatprep.subr.mxu0 0.0
    %938 = vmatpush1.msra.mxu0 0.0
    %939 = vmatprep.subr.mxu0 0.0
    %940 = vmatpush1.msra.mxu0 0.0
    %941 = vmatprep.mubr.f32.mxu0 0.0
    %942 = vmatmul.mubr.f32.gmra.mrb[0].mxu0 %v863
    %v943 = vpop.f32.mrb[0].mxu0
    %v944 = vadd.f32 0.0, %v943
    %v945 = vpop.f32.mrb[0].mxu0
    %946 = vmatprep.mubr.f32.mxu0 0.0
    %947 = vmatmul.mubr.f32.gmra.mrb[0].mxu0 %v866
    %v948 = vpop.f32.mrb[0].mxu0
    %v949 = vadd.f32 0.0, %v948
    %v950 = vpop.f32.mrb[0].mxu0
    %951 = vmatprep.mubr.f32.mxu0 0.0
    %952 = vmatmul.mubr.f32.gmra.mrb[0].mxu0 %v869
    %v953 = vpop.f32.mrb[0].mxu0
    %v954 = vadd.f32 0.0, %v953
    %v955 = vpop.f32.mrb[0].mxu0
    %956 = vmatprep.mubr.f32.mxu0 0.0
    %957 = vmatmul.mubr.f32.gmra.mrb[0].mxu0 %v872
    %v958 = vpop.f32.mrb[0].mxu0
    %v959 = vadd.f32 0.0, %v958
    %v960 = vpop.f32.mrb[0].mxu0
    %961 = vmatprep.mubr.f32.mxu0 0.0
    %962 = vmatmul.mubr.f32.gmra.mrb[0].mxu0 %v875
    %v963 = vpop.f32.mrb[0].mxu0
    %v964 = vadd.f32 0.0, %v963
    %v965 = vpop.f32.mrb[0].mxu0
    %966 = vdwg.mxu0
    %v967 = vld [vmem:[#allocation2 + $0xc0] sm:$0xff]
    %v968 = vld [vmem:[#allocation2 + $0xc8] sm:$0xff]
    %v969 = vld [vmem:[#allocation2 + $0xd0] sm:$0xff]
    %v970 = vld [vmem:[#allocation2 + $0xd8] sm:$0xff]
    %v971 = vld [vmem:[#allocation2 + $0xe0] sm:$0xff]
    %v972 = vld [vmem:[#allocation2 + $0xe8] sm:$0xff]
    %v973 = vld [vmem:[#allocation2 + $0xf0] sm:$0xff]
    %v974 = vld [vmem:[#allocation2 + $0xf8] sm:$0xff]
    %v975 = vld [vmem:[#allocation2 + $0x100] sm:$0xff]
    %v976 = vld [vmem:[#allocation2 + $0x108] sm:$0xff]
    %v977 = vld [vmem:[#allocation2 + $0x110] sm:$0xff]
    %v978 = vld [vmem:[#allocation2 + $0x118] sm:$0xff]
    %v979 = vld [vmem:[#allocation2 + $0x120] sm:$0xff]
    %v980 = vld [vmem:[#allocation2 + $0x128] sm:$0xff]
    %v981 = vld [vmem:[#allocation2 + $0x130] sm:$0xff]
    %v982 = vld [vmem:[#allocation2 + $0x138] sm:$0xff]
    %983 = vmatprep.subr.mxu0 0.0
    %984 = vmatpush1.msra.mxu0 %v967
    %985 = vmatprep.subr.mxu0 0.0
    %986 = vmatpush1.msra.mxu0 %v968
    %987 = vmatprep.subr.mxu0 0.0
    %988 = vmatpush1.msra.mxu0 %v969
    %989 = vmatprep.subr.mxu0 0.0
    %990 = vmatpush1.msra.mxu0 %v970
    %991 = vmatprep.subr.mxu0 0.0
    %992 = vmatpush1.msra.mxu0 %v971
    %993 = vmatprep.subr.mxu0 0.0
    %994 = vmatpush1.msra.mxu0 %v972
    %995 = vmatprep.subr.mxu0 0.0
    %996 = vmatpush1.msra.mxu0 %v973
    %997 = vmatprep.subr.mxu0 0.0
    %998 = vmatpush1.msra.mxu0 %v974
    %999 = vmatprep.subr.mxu0 0.0
    %1000 = vmatpush1.msra.mxu0 %v975
    %1001 = vmatprep.subr.mxu0 0.0
    %1002 = vmatpush1.msra.mxu0 %v976
    %1003 = vmatprep.subr.mxu0 0.0
    %1004 = vmatpush1.msra.mxu0 %v977
    %1005 = vmatprep.subr.mxu0 0.0
    %1006 = vmatpush1.msra.mxu0 %v978
    %1007 = vmatprep.subr.mxu0 0.0
    %1008 = vmatpush1.msra.mxu0 %v979
    %1009 = vmatprep.subr.mxu0 0.0
    %1010 = vmatpush1.msra.mxu0 %v980
    %1011 = vmatprep.subr.mxu0 0.0
    %1012 = vmatpush1.msra.mxu0 %v981
    %1013 = vmatprep.subr.mxu0 0.0
    %1014 = vmatpush1.msra.mxu0 %v982
    %1015 = vmatprep.subr.mxu0 0.0
    %1016 = vmatpush1.msra.mxu0 0.0
    %1017 = vmatprep.subr.mxu0 0.0
    %1018 = vmatpush1.msra.mxu0 0.0
    %1019 = vmatprep.subr.mxu0 0.0
    %1020 = vmatpush1.msra.mxu0 0.0
    %1021 = vmatprep.subr.mxu0 0.0
    %1022 = vmatpush1.msra.mxu0 0.0
    %1023 = vmatprep.subr.mxu0 0.0
    %1024 = vmatpush1.msra.mxu0 0.0
    %1025 = vmatprep.subr.mxu0 0.0
    %1026 = vmatpush1.msra.mxu0 0.0
    %1027 = vmatprep.subr.mxu0 0.0
    %1028 = vmatpush1.msra.mxu0 0.0
    %1029 = vmatprep.subr.mxu0 0.0
    %1030 = vmatpush1.msra.mxu0 0.0
    %1031 = vmatprep.subr.mxu0 0.0
    %1032 = vmatpush1.msra.mxu0 0.0
    %1033 = vmatprep.subr.mxu0 0.0
    %1034 = vmatpush1.msra.mxu0 0.0
    %1035 = vmatprep.subr.mxu0 0.0
    %1036 = vmatpush1.msra.mxu0 0.0
    %1037 = vmatprep.subr.mxu0 0.0
    %1038 = vmatpush1.msra.mxu0 0.0
    %1039 = vmatprep.subr.mxu0 0.0
    %1040 = vmatpush1.msra.mxu0 0.0
    %1041 = vmatprep.subr.mxu0 0.0
    %1042 = vmatpush1.msra.mxu0 0.0
    %1043 = vmatprep.subr.mxu0 0.0
    %1044 = vmatpush1.msra.mxu0 0.0
    %1045 = vmatprep.subr.mxu0 0.0
    %1046 = vmatpush1.msra.mxu0 0.0
    %1047 = vmatprep.mubr.f32.mxu0 0.0
    %1048 = vmatmul.mubr.f32.gmra.mrb[0].mxu0 %v944
    %v1049 = vpop.f32.mrb[0].mxu0
    %v1050 = vadd.f32 0.0, %v1049
    %v1051 = vpop.f32.mrb[0].mxu0
    %1052 = vmatprep.mubr.f32.mxu0 0.0
    %1053 = vmatmul.mubr.f32.gmra.mrb[0].mxu0 %v949
    %v1054 = vpop.f32.mrb[0].mxu0
    %v1055 = vadd.f32 0.0, %v1054
    %v1056 = vpop.f32.mrb[0].mxu0
    %1057 = vmatprep.mubr.f32.mxu0 0.0
    %1058 = vmatmul.mubr.f32.gmra.mrb[0].mxu0 %v954
    %v1059 = vpop.f32.mrb[0].mxu0
    %v1060 = vadd.f32 0.0, %v1059
    %v1061 = vpop.f32.mrb[0].mxu0
    %1062 = vmatprep.mubr.f32.mxu0 0.0
    %1063 = vmatmul.mubr.f32.gmra.mrb[0].mxu0 %v959
    %v1064 = vpop.f32.mrb[0].mxu0
    %v1065 = vadd.f32 0.0, %v1064
    %v1066 = vpop.f32.mrb[0].mxu0
    %1067 = vmatprep.mubr.f32.mxu0 0.0
    %1068 = vmatmul.mubr.f32.gmra.mrb[0].mxu0 %v964
    %v1069 = vpop.f32.mrb[0].mxu0
    %v1070 = vadd.f32 0.0, %v1069
    %v1071 = vpop.f32.mrb[0].mxu0
    %1072 = vdwg.mxu0
    %1073 = vmatprep.subr.mxu0 0.0
    %1074 = vmatpush1.msra.mxu0 %v846
    %1075 = vmatprep.subr.mxu0 0.0
    %1076 = vmatpush1.msra.mxu0 %v847
    %1077 = vmatprep.subr.mxu0 0.0
    %1078 = vmatpush1.msra.mxu0 %v848
    %1079 = vmatprep.subr.mxu0 0.0
    %1080 = vmatpush1.msra.mxu0 %v849
    %1081 = vmatprep.subr.mxu0 0.0
    %1082 = vmatpush1.msra.mxu0 %v850
    %1083 = vmatprep.subr.mxu0 0.0
    %1084 = vmatpush1.msra.mxu0 %v851
    %1085 = vmatprep.subr.mxu0 0.0
    %1086 = vmatpush1.msra.mxu0 %v852
    %1087 = vmatprep.subr.mxu0 0.0
    %1088 = vmatpush1.msra.mxu0 %v853
    %1089 = vmatprep.subr.mxu0 0.0
    %1090 = vmatpush1.msra.mxu0 %v854
    %1091 = vmatprep.subr.mxu0 0.0
    %1092 = vmatpush1.msra.mxu0 %v855
    %1093 = vmatprep.subr.mxu0 0.0
    %1094 = vmatpush1.msra.mxu0 %v856
    %1095 = vmatprep.subr.mxu0 0.0
    %1096 = vmatpush1.msra.mxu0 %v857
    %1097 = vmatprep.subr.mxu0 0.0
    %1098 = vmatpush1.msra.mxu0 %v858
    %1099 = vmatprep.subr.mxu0 0.0
    %1100 = vmatpush1.msra.mxu0 %v859
    %1101 = vmatprep.subr.mxu0 0.0
    %1102 = vmatpush1.msra.mxu0 %v860
    %1103 = vmatprep.subr.mxu0 0.0
    %1104 = vmatpush1.msra.mxu0 %v861
    %1105 = vmatprep.subr.mxu0 0.0
    %1106 = vmatpush1.msra.mxu0 0.0
    %1107 = vmatprep.subr.mxu0 0.0
    %1108 = vmatpush1.msra.mxu0 0.0
    %1109 = vmatprep.subr.mxu0 0.0
    %1110 = vmatpush1.msra.mxu0 0.0
    %1111 = vmatprep.subr.mxu0 0.0
    %1112 = vmatpush1.msra.mxu0 0.0
    %1113 = vmatprep.subr.mxu0 0.0
    %1114 = vmatpush1.msra.mxu0 0.0
    %1115 = vmatprep.subr.mxu0 0.0
    %1116 = vmatpush1.msra.mxu0 0.0
    %1117 = vmatprep.subr.mxu0 0.0
    %1118 = vmatpush1.msra.mxu0 0.0
    %1119 = vmatprep.subr.mxu0 0.0
    %1120 = vmatpush1.msra.mxu0 0.0
    %1121 = vmatprep.subr.mxu0 0.0
    %1122 = vmatpush1.msra.mxu0 0.0
    %1123 = vmatprep.subr.mxu0 0.0
    %1124 = vmatpush1.msra.mxu0 0.0
    %1125 = vmatprep.subr.mxu0 0.0
    %1126 = vmatpush1.msra.mxu0 0.0
    %1127 = vmatprep.subr.mxu0 0.0
    %1128 = vmatpush1.msra.mxu0 0.0
    %1129 = vmatprep.subr.mxu0 0.0
    %1130 = vmatpush1.msra.mxu0 0.0
    %1131 = vmatprep.subr.mxu0 0.0
    %1132 = vmatpush1.msra.mxu0 0.0
    %1133 = vmatprep.subr.mxu0 0.0
    %1134 = vmatpush1.msra.mxu0 0.0
    %1135 = vmatprep.subr.mxu0 0.0
    %1136 = vmatpush1.msra.mxu0 0.0
    %1137 = vmatprep.mubr.f32.mxu0 0.0
    %1138 = vmatmul.mubr.f32.gmra.mrb[0].mxu0 %v841
    %v1139 = vpop.f32.mrb[0].mxu0
    %v1140 = vadd.f32 %v1050, %v1139
    %v1141 = vpop.f32.mrb[0].mxu0
    %1142 = vmatprep.mubr.f32.mxu0 0.0
    %1143 = vmatmul.mubr.f32.gmra.mrb[0].mxu0 %v842
    %v1144 = vpop.f32.mrb[0].mxu0
    %v1145 = vadd.f32 %v1055, %v1144
    %v1146 = vpop.f32.mrb[0].mxu0
    %1147 = vmatprep.mubr.f32.mxu0 0.0
    %1148 = vmatmul.mubr.f32.gmra.mrb[0].mxu0 %v843
    %v1149 = vpop.f32.mrb[0].mxu0
    %v1150 = vadd.f32 %v1060, %v1149
    %v1151 = vpop.f32.mrb[0].mxu0
    %1152 = vmatprep.mubr.f32.mxu0 0.0
    %1153 = vmatmul.mubr.f32.gmra.mrb[0].mxu0 %v844
    %v1154 = vpop.f32.mrb[0].mxu0
    %v1155 = vadd.f32 %v1065, %v1154
    %v1156 = vpop.f32.mrb[0].mxu0
    %1157 = vmatprep.mubr.f32.mxu0 0.0
    %1158 = vmatmul.mubr.f32.gmra.mrb[0].mxu0 %v845
    %v1159 = vpop.f32.mrb[0].mxu0
    %v1160 = vadd.f32 %v1070, %v1159
    %v1161 = vpop.f32.mrb[0].mxu0
    %1162 = vdwg.mxu0
    %v1164 = vsel %vm59, %v46, 0
    %v1167 = vsel %vm59, %v47, 0
    %v1170 = vsel %vm59, %v48, 0
    %v1173 = vsel %vm59, %v49, 0
    %v1176 = vsel %vm59, %v50, 0
    %1178 = vmatprep.subr.mxu0 0.0
    %1179 = vmatpush1.msra.mxu0 %v841
    %1180 = vmatprep.subr.mxu0 0.0
    %1181 = vmatpush1.msra.mxu0 %v842
    %1182 = vmatprep.subr.mxu0 0.0
    %1183 = vmatpush1.msra.mxu0 %v843
    %1184 = vmatprep.subr.mxu0 0.0
    %1185 = vmatpush1.msra.mxu0 %v844
    %1186 = vmatprep.subr.mxu0 0.0
    %1187 = vmatpush1.msra.mxu0 %v845
    %1188 = vmatprep.subr.mxu0 0.0
    %1189 = vmatpush1.msra.mxu0 0.0
    %1190 = vmatprep.subr.mxu0 0.0
    %1191 = vmatpush1.msra.mxu0 0.0
    %1192 = vmatprep.subr.mxu0 0.0
    %1193 = vmatpush1.msra.mxu0 0.0
    %1194 = vmatprep.subr.mxu0 0.0
    %1195 = vmatpush1.msra.mxu0 0.0
    %1196 = vmatprep.subr.mxu0 0.0
    %1197 = vmatpush1.msra.mxu0 0.0
    %1198 = vmatprep.subr.mxu0 0.0
    %1199 = vmatpush1.msra.mxu0 0.0
    %1200 = vmatprep.subr.mxu0 0.0
    %1201 = vmatpush1.msra.mxu0 0.0
    %1202 = vmatprep.subr.mxu0 0.0
    %1203 = vmatpush1.msra.mxu0 0.0
    %1204 = vmatprep.subr.mxu0 0.0
    %1205 = vmatpush1.msra.mxu0 0.0
    %1206 = vmatprep.subr.mxu0 0.0
    %1207 = vmatpush1.msra.mxu0 0.0
    %1208 = vmatprep.subr.mxu0 0.0
    %1209 = vmatpush1.msra.mxu0 0.0
    %1210 = vmatprep.subr.mxu0 0.0
    %1211 = vmatpush1.msra.mxu0 0.0
    %1212 = vmatprep.subr.mxu0 0.0
    %1213 = vmatpush1.msra.mxu0 0.0
    %1214 = vmatprep.subr.mxu0 0.0
    %1215 = vmatpush1.msra.mxu0 0.0
    %1216 = vmatprep.subr.mxu0 0.0
    %1217 = vmatpush1.msra.mxu0 0.0
    %1218 = vmatprep.subr.mxu0 0.0
    %1219 = vmatpush1.msra.mxu0 0.0
    %1220 = vmatprep.subr.mxu0 0.0
    %1221 = vmatpush1.msra.mxu0 0.0
    %1222 = vmatprep.subr.mxu0 0.0
    %1223 = vmatpush1.msra.mxu0 0.0
    %1224 = vmatprep.subr.mxu0 0.0
    %1225 = vmatpush1.msra.mxu0 0.0
    %1226 = vmatprep.subr.mxu0 0.0
    %1227 = vmatpush1.msra.mxu0 0.0
    %1228 = vmatprep.subr.mxu0 0.0
    %1229 = vmatpush1.msra.mxu0 0.0
    %1230 = vmatprep.subr.mxu0 0.0
    %1231 = vmatpush1.msra.mxu0 0.0
    %1232 = vmatprep.subr.mxu0 0.0
    %1233 = vmatpush1.msra.mxu0 0.0
    %1234 = vmatprep.subr.mxu0 0.0
    %1235 = vmatpush1.msra.mxu0 0.0
    %1236 = vmatprep.subr.mxu0 0.0
    %1237 = vmatpush1.msra.mxu0 0.0
    %1238 = vmatprep.subr.mxu0 0.0
    %1239 = vmatpush1.msra.mxu0 0.0
    %1240 = vmatprep.subr.mxu0 0.0
    %1241 = vmatpush1.msra.mxu0 0.0
    %1242 = vmatprep.mubr.f32.mxu0 0.0
    %1243 = vmatmul.mubr.f32.gmra.mrb[0].mxu0 %v1164
    %v1244 = vpop.f32.mrb[0].mxu0
    %v1245 = vadd.f32 0.0, %v1244
    %v1246 = vpop.f32.mrb[0].mxu0
    %1247 = vmatprep.mubr.f32.mxu0 0.0
    %1248 = vmatmul.mubr.f32.gmra.mrb[0].mxu0 %v1167
    %v1249 = vpop.f32.mrb[0].mxu0
    %v1250 = vadd.f32 0.0, %v1249
    %v1251 = vpop.f32.mrb[0].mxu0
    %1252 = vmatprep.mubr.f32.mxu0 0.0
    %1253 = vmatmul.mubr.f32.gmra.mrb[0].mxu0 %v1170
    %v1254 = vpop.f32.mrb[0].mxu0
    %v1255 = vadd.f32 0.0, %v1254
    %v1256 = vpop.f32.mrb[0].mxu0
    %1257 = vmatprep.mubr.f32.mxu0 0.0
    %1258 = vmatmul.mubr.f32.gmra.mrb[0].mxu0 %v1173
    %v1259 = vpop.f32.mrb[0].mxu0
    %v1260 = vadd.f32 0.0, %v1259
    %v1261 = vpop.f32.mrb[0].mxu0
    %1262 = vmatprep.mubr.f32.mxu0 0.0
    %1263 = vmatmul.mubr.f32.gmra.mrb[0].mxu0 %v1176
    %v1264 = vpop.f32.mrb[0].mxu0
    %v1265 = vadd.f32 0.0, %v1264
    %v1266 = vpop.f32.mrb[0].mxu0
    %1267 = vdwg.mxu0
    %v1268 = vld [vmem:[#allocation2 + $0x1c0] sm:$0xff]
    %v1269 = vld [vmem:[#allocation2 + $0x1c8] sm:$0xff]
    %v1270 = vld [vmem:[#allocation2 + $0x1d0] sm:$0xff]
    %v1271 = vld [vmem:[#allocation2 + $0x1d8] sm:$0xff]
    %v1272 = vld [vmem:[#allocation2 + $0x1e0] sm:$0xff]
    %v1273 = vld [vmem:[#allocation2 + $0x1e8] sm:$0xff]
    %v1274 = vld [vmem:[#allocation2 + $0x1f0] sm:$0xff]
    %v1275 = vld [vmem:[#allocation2 + $0x1f8] sm:$0xff]
    %v1276 = vld [vmem:[#allocation2 + $0x200] sm:$0xff]
    %v1277 = vld [vmem:[#allocation2 + $0x208] sm:$0xff]
    %v1278 = vld [vmem:[#allocation2 + $0x210] sm:$0xff]
    %v1279 = vld [vmem:[#allocation2 + $0x218] sm:$0xff]
    %v1280 = vld [vmem:[#allocation2 + $0x220] sm:$0xff]
    %v1281 = vld [vmem:[#allocation2 + $0x228] sm:$0xff]
    %v1282 = vld [vmem:[#allocation2 + $0x230] sm:$0xff]
    %v1283 = vld [vmem:[#allocation2 + $0x238] sm:$0xff]
    %1284 = vmatprep.subr.mxu0 0.0
    %1285 = vmatpush1.msra.mxu0 %v1268
    %1286 = vmatprep.subr.mxu0 0.0
    %1287 = vmatpush1.msra.mxu0 %v1269
    %1288 = vmatprep.subr.mxu0 0.0
    %1289 = vmatpush1.msra.mxu0 %v1270
    %1290 = vmatprep.subr.mxu0 0.0
    %1291 = vmatpush1.msra.mxu0 %v1271
    %1292 = vmatprep.subr.mxu0 0.0
    %1293 = vmatpush1.msra.mxu0 %v1272
    %1294 = vmatprep.subr.mxu0 0.0
    %1295 = vmatpush1.msra.mxu0 %v1273
    %1296 = vmatprep.subr.mxu0 0.0
    %1297 = vmatpush1.msra.mxu0 %v1274
    %1298 = vmatprep.subr.mxu0 0.0
    %1299 = vmatpush1.msra.mxu0 %v1275
    %1300 = vmatprep.subr.mxu0 0.0
    %1301 = vmatpush1.msra.mxu0 %v1276
    %1302 = vmatprep.subr.mxu0 0.0
    %1303 = vmatpush1.msra.mxu0 %v1277
    %1304 = vmatprep.subr.mxu0 0.0
    %1305 = vmatpush1.msra.mxu0 %v1278
    %1306 = vmatprep.subr.mxu0 0.0
    %1307 = vmatpush1.msra.mxu0 %v1279
    %1308 = vmatprep.subr.mxu0 0.0
    %1309 = vmatpush1.msra.mxu0 %v1280
    %1310 = vmatprep.subr.mxu0 0.0
    %1311 = vmatpush1.msra.mxu0 %v1281
    %1312 = vmatprep.subr.mxu0 0.0
    %1313 = vmatpush1.msra.mxu0 %v1282
    %1314 = vmatprep.subr.mxu0 0.0
    %1315 = vmatpush1.msra.mxu0 %v1283
    %1316 = vmatprep.subr.mxu0 0.0
    %1317 = vmatpush1.msra.mxu0 0.0
    %1318 = vmatprep.subr.mxu0 0.0
    %1319 = vmatpush1.msra.mxu0 0.0
    %1320 = vmatprep.subr.mxu0 0.0
    %1321 = vmatpush1.msra.mxu0 0.0
    %1322 = vmatprep.subr.mxu0 0.0
    %1323 = vmatpush1.msra.mxu0 0.0
    %1324 = vmatprep.subr.mxu0 0.0
    %1325 = vmatpush1.msra.mxu0 0.0
    %1326 = vmatprep.subr.mxu0 0.0
    %1327 = vmatpush1.msra.mxu0 0.0
    %1328 = vmatprep.subr.mxu0 0.0
    %1329 = vmatpush1.msra.mxu0 0.0
    %1330 = vmatprep.subr.mxu0 0.0
    %1331 = vmatpush1.msra.mxu0 0.0
    %1332 = vmatprep.subr.mxu0 0.0
    %1333 = vmatpush1.msra.mxu0 0.0
    %1334 = vmatprep.subr.mxu0 0.0
    %1335 = vmatpush1.msra.mxu0 0.0
    %1336 = vmatprep.subr.mxu0 0.0
    %1337 = vmatpush1.msra.mxu0 0.0
    %1338 = vmatprep.subr.mxu0 0.0
    %1339 = vmatpush1.msra.mxu0 0.0
    %1340 = vmatprep.subr.mxu0 0.0
    %1341 = vmatpush1.msra.mxu0 0.0
    %1342 = vmatprep.subr.mxu0 0.0
    %1343 = vmatpush1.msra.mxu0 0.0
    %1344 = vmatprep.subr.mxu0 0.0
    %1345 = vmatpush1.msra.mxu0 0.0
    %1346 = vmatprep.subr.mxu0 0.0
    %1347 = vmatpush1.msra.mxu0 0.0
    %1348 = vmatprep.mubr.f32.mxu0 0.0
    %1349 = vmatmul.mubr.f32.gmra.mrb[0].mxu0 %v1245
    %v1350 = vpop.f32.mrb[0].mxu0
    %v1351 = vadd.f32 0.0, %v1350
    %v1352 = vpop.f32.mrb[0].mxu0
    %1353 = vmatprep.mubr.f32.mxu0 0.0
    %1354 = vmatmul.mubr.f32.gmra.mrb[0].mxu0 %v1250
    %v1355 = vpop.f32.mrb[0].mxu0
    %v1356 = vadd.f32 0.0, %v1355
    %v1357 = vpop.f32.mrb[0].mxu0
    %1358 = vmatprep.mubr.f32.mxu0 0.0
    %1359 = vmatmul.mubr.f32.gmra.mrb[0].mxu0 %v1255
    %v1360 = vpop.f32.mrb[0].mxu0
    %v1361 = vadd.f32 0.0, %v1360
    %v1362 = vpop.f32.mrb[0].mxu0
    %1363 = vmatprep.mubr.f32.mxu0 0.0
    %1364 = vmatmul.mubr.f32.gmra.mrb[0].mxu0 %v1260
    %v1365 = vpop.f32.mrb[0].mxu0
    %v1366 = vadd.f32 0.0, %v1365
    %v1367 = vpop.f32.mrb[0].mxu0
    %1368 = vmatprep.mubr.f32.mxu0 0.0
    %1369 = vmatmul.mubr.f32.gmra.mrb[0].mxu0 %v1265
    %v1370 = vpop.f32.mrb[0].mxu0
    %v1371 = vadd.f32 0.0, %v1370
    %v1372 = vpop.f32.mrb[0].mxu0
    %1373 = vdwg.mxu0
    %v1374 = vadd.f32 %v1140, %v1351
    %v1375 = vadd.f32 %v1145, %v1356
    %v1376 = vadd.f32 %v1150, %v1361
    %v1377 = vadd.f32 %v1155, %v1366
    %v1378 = vadd.f32 %v1160, %v1371
    %v1379 = vld [vmem:[#allocation2 + $0x368] sm:$0x7]
    %v1380 = vlaneseq
    %v1381 = vshrl.u32 %v1380, 7
    %v1382 = vsub.s32 0, %v1381
    %v1383 = vrot.slane %v1379, %v1382
    %v1384 = vadd.f32 %v1374, %v1383
    %v1385 = vadd.f32 %v1375, %v1383
    %v1386 = vadd.f32 %v1376, %v1383
    %v1387 = vadd.f32 %v1377, %v1383
    %v1388 = vadd.f32 %v1378, %v1383
    %v1389 = vmax.f32 %v1384, 0.0
    %v1390 = vmax.f32 %v1385, 0.0
    %v1391 = vmax.f32 %v1386, 0.0
    %v1392 = vmax.f32 %v1387, 0.0
    %v1393 = vmax.f32 %v1388, 0.0
    %v1394 = vlaneseq
    %v1395 = vshrl.u32 %v1394, 7
    %v1396 = vsub.s32 1, %v1395
    %v1397 = vrot.slane %v1379, %v1396
    %v1398 = vmul.f32 %v1389, %v1397
    %v1399 = vmul.f32 %v1390, %v1397
    %v1400 = vmul.f32 %v1391, %v1397
    %v1401 = vmul.f32 %v1392, %v1397
    %v1402 = vmul.f32 %v1393, %v1397
    %v1403 = vlaneseq
    %v1404 = vshrl.u32 %v1403, 7
    %v1405 = vsub.s32 2, %v1404
    %v1406 = vrot.slane %v1379, %v1405
    %v1407 = vadd.f32 %v1398, %v1406
    %v1408 = vadd.f32 %v1399, %v1406
    %v1409 = vadd.f32 %v1400, %v1406
    %v1410 = vadd.f32 %v1401, %v1406
    %v1411 = vadd.f32 %v1402, %v1406
    %v1412 = vld [vmem:[#allocation2 + $0x370] sm:$0x3]
    %v1414 = vsel %vm59, %v1412, 0
    %1416 = vmatprep.subr.mxu0 0.0
    %1417 = vmatpush1.msra.mxu0 %v1407
    %1418 = vmatprep.subr.mxu0 0.0
    %1419 = vmatpush1.msra.mxu0 %v1408
    %1420 = vmatprep.subr.mxu0 0.0
    %1421 = vmatpush1.msra.mxu0 %v1409
    %1422 = vmatprep.subr.mxu0 0.0
    %1423 = vmatpush1.msra.mxu0 %v1410
    %1424 = vmatprep.subr.mxu0 0.0
    %1425 = vmatpush1.msra.mxu0 %v1411
    %1426 = vmatprep.subr.mxu0 0.0
    %1427 = vmatpush1.msra.mxu0 0.0
    %1428 = vmatprep.subr.mxu0 0.0
    %1429 = vmatpush1.msra.mxu0 0.0
    %1430 = vmatprep.subr.mxu0 0.0
    %1431 = vmatpush1.msra.mxu0 0.0
    %1432 = vmatprep.subr.mxu0 0.0
    %1433 = vmatpush1.msra.mxu0 0.0
    %1434 = vmatprep.subr.mxu0 0.0
    %1435 = vmatpush1.msra.mxu0 0.0
    %1436 = vmatprep.subr.mxu0 0.0
    %1437 = vmatpush1.msra.mxu0 0.0
    %1438 = vmatprep.subr.mxu0 0.0
    %1439 = vmatpush1.msra.mxu0 0.0
    %1440 = vmatprep.subr.mxu0 0.0
    %1441 = vmatpush1.msra.mxu0 0.0
    %1442 = vmatprep.subr.mxu0 0.0
    %1443 = vmatpush1.msra.mxu0 0.0
    %1444 = vmatprep.subr.mxu0 0.0
    %1445 = vmatpush1.msra.mxu0 0.0
    %1446 = vmatprep.subr.mxu0 0.0
    %1447 = vmatpush1.msra.mxu0 0.0
    %1448 = vmatprep.subr.mxu0 0.0
    %1449 = vmatpush1.msra.mxu0 0.0
    %1450 = vmatprep.subr.mxu0 0.0
    %1451 = vmatpush1.msra.mxu0 0.0
    %1452 = vmatprep.subr.mxu0 0.0
    %1453 = vmatpush1.msra.mxu0 0.0
    %1454 = vmatprep.subr.mxu0 0.0
    %1455 = vmatpush1.msra.mxu0 0.0
    %1456 = vmatprep.subr.mxu0 0.0
    %1457 = vmatpush1.msra.mxu0 0.0
    %1458 = vmatprep.subr.mxu0 0.0
    %1459 = vmatpush1.msra.mxu0 0.0
    %1460 = vmatprep.subr.mxu0 0.0
    %1461 = vmatpush1.msra.mxu0 0.0
    %1462 = vmatprep.subr.mxu0 0.0
    %1463 = vmatpush1.msra.mxu0 0.0
    %1464 = vmatprep.subr.mxu0 0.0
    %1465 = vmatpush1.msra.mxu0 0.0
    %1466 = vmatprep.subr.mxu0 0.0
    %1467 = vmatpush1.msra.mxu0 0.0
    %1468 = vmatprep.subr.mxu0 0.0
    %1469 = vmatpush1.msra.mxu0 0.0
    %1470 = vmatprep.subr.mxu0 0.0
    %1471 = vmatpush1.msra.mxu0 0.0
    %1472 = vmatprep.subr.mxu0 0.0
    %1473 = vmatpush1.msra.mxu0 0.0
    %1474 = vmatprep.subr.mxu0 0.0
    %1475 = vmatpush1.msra.mxu0 0.0
    %1476 = vmatprep.subr.mxu0 0.0
    %1477 = vmatpush1.msra.mxu0 0.0
    %1478 = vmatprep.subr.mxu0 0.0
    %1479 = vmatpush1.msra.mxu0 0.0
    %1480 = vmatprep.mubr.f32.mxu0 0.0
    %1481 = vmatmul.mubr.f32.gmra.mrb[0].mxu0 %v1414
    %v1482 = vpop.f32.mrb[0].mxu0
    %v1483 = vadd.f32 0.0, %v1482
    %v1484 = vpop.f32.mrb[0].mxu0
    %1485 = vdwg.mxu0
    %v1486 = vld [vmem:[#allocation2 + $0x378] sm:$0xff]
    %v1487 = vld [vmem:[#allocation2 + $0x380] sm:$0xff]
    %v1488 = vld [vmem:[#allocation2 + $0x388] sm:$0xff]
    %v1489 = vld [vmem:[#allocation2 + $0x390] sm:$0xff]
    %v1490 = vld [vmem:[#allocation2 + $0x398] sm:$0xff]
    %v1491 = vld [vmem:[#allocation2 + $0x3a0] sm:$0xff]
    %v1492 = vld [vmem:[#allocation2 + $0x3a8] sm:$0xff]
    %v1493 = vld [vmem:[#allocation2 + $0x3b0] sm:$0xff]
    %v1494 = vld [vmem:[#allocation2 + $0x3b8] sm:$0xff]
    %v1495 = vld [vmem:[#allocation2 + $0x3c0] sm:$0xff]
    %v1496 = vld [vmem:[#allocation2 + $0x3c8] sm:$0xff]
    %v1497 = vld [vmem:[#allocation2 + $0x3d0] sm:$0xff]
    %v1498 = vld [vmem:[#allocation2 + $0x3d8] sm:$0xff]
    %v1499 = vld [vmem:[#allocation2 + $0x3e0] sm:$0xff]
    %v1500 = vld [vmem:[#allocation2 + $0x3e8] sm:$0xff]
    %v1501 = vld [vmem:[#allocation2 + $0x3f0] sm:$0xff]
    %v1502 = vld [vmem:[#allocation2 + $0x3f8] sm:$0x1]
    %v1503 = vlaneseq
    %v1504 = vshrl.u32 %v1503, 7
    %v1505 = vsub.s32 0, %v1504
    %v1506 = vrot.slane %v1502, %v1505
    %1507 = vmatprep.subr.mxu0 0.0
    %1508 = vmatpush1.msra.mxu0 %v1486
    %1509 = vmatprep.subr.mxu0 0.0
    %1510 = vmatpush1.msra.mxu0 %v1487
    %1511 = vmatprep.subr.mxu0 0.0
    %1512 = vmatpush1.msra.mxu0 %v1488
    %1513 = vmatprep.subr.mxu0 0.0
    %1514 = vmatpush1.msra.mxu0 %v1489
    %1515 = vmatprep.subr.mxu0 0.0
    %1516 = vmatpush1.msra.mxu0 %v1490
    %1517 = vmatprep.subr.mxu0 0.0
    %1518 = vmatpush1.msra.mxu0 %v1491
    %1519 = vmatprep.subr.mxu0 0.0
    %1520 = vmatpush1.msra.mxu0 %v1492
    %1521 = vmatprep.subr.mxu0 0.0
    %1522 = vmatpush1.msra.mxu0 %v1493
    %1523 = vmatprep.subr.mxu0 0.0
    %1524 = vmatpush1.msra.mxu0 %v1494
    %1525 = vmatprep.subr.mxu0 0.0
    %1526 = vmatpush1.msra.mxu0 %v1495
    %1527 = vmatprep.subr.mxu0 0.0
    %1528 = vmatpush1.msra.mxu0 %v1496
    %1529 = vmatprep.subr.mxu0 0.0
    %1530 = vmatpush1.msra.mxu0 %v1497
    %1531 = vmatprep.subr.mxu0 0.0
    %1532 = vmatpush1.msra.mxu0 %v1498
    %1533 = vmatprep.subr.mxu0 0.0
    %1534 = vmatpush1.msra.mxu0 %v1499
    %1535 = vmatprep.subr.mxu0 0.0
    %1536 = vmatpush1.msra.mxu0 %v1500
    %1537 = vmatprep.subr.mxu0 0.0
    %1538 = vmatpush1.msra.mxu0 %v1501
    %1539 = vmatprep.subr.mxu0 0.0
    %1540 = vmatpush1.msra.mxu0 0.0
    %1541 = vmatprep.subr.mxu0 0.0
    %1542 = vmatpush1.msra.mxu0 0.0
    %1543 = vmatprep.subr.mxu0 0.0
    %1544 = vmatpush1.msra.mxu0 0.0
    %1545 = vmatprep.subr.mxu0 0.0
    %1546 = vmatpush1.msra.mxu0 0.0
    %1547 = vmatprep.subr.mxu0 0.0
    %1548 = vmatpush1.msra.mxu0 0.0
    %1549 = vmatprep.subr.mxu0 0.0
    %1550 = vmatpush1.msra.mxu0 0.0
    %1551 = vmatprep.subr.mxu0 0.0
    %1552 = vmatpush1.msra.mxu0 0.0
    %1553 = vmatprep.subr.mxu0 0.0
    %1554 = vmatpush1.msra.mxu0 0.0
    %1555 = vmatprep.subr.mxu0 0.0
    %1556 = vmatpush1.msra.mxu0 0.0
    %1557 = vmatprep.subr.mxu0 0.0
    %1558 = vmatpush1.msra.mxu0 0.0
    %1559 = vmatprep.subr.mxu0 0.0
    %1560 = vmatpush1.msra.mxu0 0.0
    %1561 = vmatprep.subr.mxu0 0.0
    %1562 = vmatpush1.msra.mxu0 0.0
    %1563 = vmatprep.subr.mxu0 0.0
    %1564 = vmatpush1.msra.mxu0 0.0
    %1565 = vmatprep.subr.mxu0 0.0
    %1566 = vmatpush1.msra.mxu0 0.0
    %1567 = vmatprep.subr.mxu0 0.0
    %1568 = vmatpush1.msra.mxu0 0.0
    %1569 = vmatprep.subr.mxu0 0.0
    %1570 = vmatpush1.msra.mxu0 0.0
    %1571 = vmatprep.mubr.f32.mxu0 0.0
    %1572 = vmatmul.mubr.f32.gmra.mrb[0].mxu0 %v1483
    %v1573 = vpop.f32.mrb[0].mxu0
    %v1574 = vadd.f32 %v1506, %v1573
    %v1575 = vpop.f32.mrb[0].mxu0
    %1576 = vdwg.mxu0
    %v1577 = vmax.f32 %v1574, 0.0
    %v1578 = vld [vmem:[#allocation2 + $0x400] sm:$0xff]
    %v1579 = vld [vmem:[#allocation2 + $0x408] sm:$0xff]
    %v1580 = vld [vmem:[#allocation2 + $0x410] sm:$0xff]
    %v1581 = vld [vmem:[#allocation2 + $0x418] sm:$0xff]
    %v1582 = vld [vmem:[#allocation2 + $0x420] sm:$0x1]
    %v1583 = vlaneseq
    %v1584 = vshrl.u32 %v1583, 7
    %v1585 = vsub.s32 0, %v1584
    %v1586 = vrot.slane %v1582, %v1585
    %vm1587 = vcmask 261120
    %v1589 = vsel %vm1587, %v1577, 0
    %1591 = vmatprep.subr.mxu0 0.0
    %1592 = vmatpush1.msra.mxu0 %v1578
    %1593 = vmatprep.subr.mxu0 0.0
    %1594 = vmatpush1.msra.mxu0 %v1579
    %1595 = vmatprep.subr.mxu0 0.0
    %1596 = vmatpush1.msra.mxu0 %v1580
    %1597 = vmatprep.subr.mxu0 0.0
    %1598 = vmatpush1.msra.mxu0 %v1581
    %1599 = vmatprep.subr.mxu0 0.0
    %1600 = vmatpush1.msra.mxu0 0.0
    %1601 = vmatprep.subr.mxu0 0.0
    %1602 = vmatpush1.msra.mxu0 0.0
    %1603 = vmatprep.subr.mxu0 0.0
    %1604 = vmatpush1.msra.mxu0 0.0
    %1605 = vmatprep.subr.mxu0 0.0
    %1606 = vmatpush1.msra.mxu0 0.0
    %1607 = vmatprep.subr.mxu0 0.0
    %1608 = vmatpush1.msra.mxu0 0.0
    %1609 = vmatprep.subr.mxu0 0.0
    %1610 = vmatpush1.msra.mxu0 0.0
    %1611 = vmatprep.subr.mxu0 0.0
    %1612 = vmatpush1.msra.mxu0 0.0
    %1613 = vmatprep.subr.mxu0 0.0
    %1614 = vmatpush1.msra.mxu0 0.0
    %1615 = vmatprep.subr.mxu0 0.0
    %1616 = vmatpush1.msra.mxu0 0.0
    %1617 = vmatprep.subr.mxu0 0.0
    %1618 = vmatpush1.msra.mxu0 0.0
    %1619 = vmatprep.subr.mxu0 0.0
    %1620 = vmatpush1.msra.mxu0 0.0
    %1621 = vmatprep.subr.mxu0 0.0
    %1622 = vmatpush1.msra.mxu0 0.0
    %1623 = vmatprep.subr.mxu0 0.0
    %1624 = vmatpush1.msra.mxu0 0.0
    %1625 = vmatprep.subr.mxu0 0.0
    %1626 = vmatpush1.msra.mxu0 0.0
    %1627 = vmatprep.subr.mxu0 0.0
    %1628 = vmatpush1.msra.mxu0 0.0
    %1629 = vmatprep.subr.mxu0 0.0
    %1630 = vmatpush1.msra.mxu0 0.0
    %1631 = vmatprep.subr.mxu0 0.0
    %1632 = vmatpush1.msra.mxu0 0.0
    %1633 = vmatprep.subr.mxu0 0.0
    %1634 = vmatpush1.msra.mxu0 0.0
    %1635 = vmatprep.subr.mxu0 0.0
    %1636 = vmatpush1.msra.mxu0 0.0
    %1637 = vmatprep.subr.mxu0 0.0
    %1638 = vmatpush1.msra.mxu0 0.0
    %1639 = vmatprep.subr.mxu0 0.0
    %1640 = vmatpush1.msra.mxu0 0.0
    %1641 = vmatprep.subr.mxu0 0.0
    %1642 = vmatpush1.msra.mxu0 0.0
    %1643 = vmatprep.subr.mxu0 0.0
    %1644 = vmatpush1.msra.mxu0 0.0
    %1645 = vmatprep.subr.mxu0 0.0
    %1646 = vmatpush1.msra.mxu0 0.0
    %1647 = vmatprep.subr.mxu0 0.0
    %1648 = vmatpush1.msra.mxu0 0.0
    %1649 = vmatprep.subr.mxu0 0.0
    %1650 = vmatpush1.msra.mxu0 0.0
    %1651 = vmatprep.subr.mxu0 0.0
    %1652 = vmatpush1.msra.mxu0 0.0
    %1653 = vmatprep.subr.mxu0 0.0
    %1654 = vmatpush1.msra.mxu0 0.0
    %1655 = vmatprep.mubr.f32.mxu0 0.0
    %1656 = vmatmul.mubr.f32.gmra.mrb[0].mxu0 %v1589
    %v1657 = vpop.f32.mrb[0].mxu0
    %v1658 = vadd.f32 %v1586, %v1657
    %v1659 = vpop.f32.mrb[0].mxu0
    %1660 = vdwg.mxu0
    %vm1661 = vcmask 74752
    %1662 = vst.msk [vmem:[#allocation5] sm:$0x3] %vm1661, %v1658
    // Predicated region
    $region14: #{cnn2d_forward.1} parent=1 // pred_check
      _
    $region15: #{cnn2d_forward.1} parent=1 // pred_check_branch
      %1664 = sbr.rel (0) target = $region17
    $region16: #{cnn2d_forward.1} parent=1 // pred_region
      %s1666 = ssub.s32 32, 32
      %1667 = vsyncadd [#allocation4], %s1666
      %s1669 = sshll.u32 [#allocation5], 4
      %s1670 = int_to_ptr.vmem [resolvable:$true] %s1669
      %1672 = dma.vmem_to_hbm [thread:$0]  %s1670, 32, %s2, [#allocation4]
    $region17: #{cnn2d_forward.1} parent=1 // pred_fallthru
      _
    // Predicated region
    $region18: #{cnn2d_forward.1} parent=1 // pred_check
      _
    $region19: #{cnn2d_forward.1} parent=1 // pred_check_branch
      %1674 = sbr.rel (0) target = $region21
    $region20: #{cnn2d_forward.1} parent=1 // pred_region
      %1675 = dma.done [#allocation4], 32
    $region21: #{cnn2d_forward.1} parent=1 // pred_fallthru
      _
    %1676 = vsyncpa [#allocation3], 1
    %1677 = vsyncpa [#allocation4], 1

</llo_original>
